<compile_context>
chip_gen: v7x
topology: tpu7x:2x2x1
jax: 0.10.0
libtpu: 0.0.40
codegen_flags: <defaults>
</compile_context>

<pallas_src>
import functools

import jax
import jax.numpy as jnp
from jax.experimental import pallas as pl
from jax.experimental.pallas import tpu as pltpu


def _channel_attention_kernel(gamma_ref, x_ref, o_ref, *scratch,
                              tile_n, n_valid, use_bf16):
    # gamma_ref : SMEM (1,)       float32
    # x_ref     : VMEM (c, n_pad) float32   -- one batch element, resident across tiles
    # o_ref     : VMEM (c, n_pad) float32   -- accumulator, resident across tiles
    # scratch   : (x16_ref,) VMEM (c, n_pad) bfloat16 iff use_bf16
    n_pad = x_ref.shape[-1]
    j = pl.program_id(1)

    @pl.when(j == 0)
    def _init():
        # Residual init: out starts as the input; attention accumulates on top.
        o_ref[...] = x_ref[...]
        if use_bf16:
            # bf16 copy of the resident x slab, built once per batch; feeds both
            # MXU matmuls (f32 MXU issue rate is a small fraction of bf16).
            scratch[0][...] = x_ref[...].astype(jnp.bfloat16)

    start = pl.multiple_of(j * tile_n, 128)
    x_tile_f32 = x_ref[:, pl.ds(start, tile_n)]            # (c, tn) f32, for scaled LHS
    if use_bf16:
        x_tile_mm = scratch[0][:, pl.ds(start, tile_n)]    # (c, tn)   bf16
        x_all_mm = scratch[0][...]                         # (c, n_pad) bf16
    else:
        x_tile_mm = x_tile_f32
        x_all_mm = x_ref[...]

    # Scores for this block of attention rows:
    #   s[i, m] = sum_c x[c, start+i] * x[c, m]
    # contracting dim 0 of both operands feeds the MXU directly (no transposed
    # N-wide operand); f32 accumulation.
    s = jax.lax.dot_general(
        x_tile_mm, x_all_mm,
        dimension_numbers=(((0,), (0,)), ((), ())),
        preferred_element_type=jnp.float32)                 # (tn, n_pad) f32

    if n_pad > n_valid:
        # Padded columns must not contribute to the softmax denominator.
        col = jax.lax.broadcasted_iota(jnp.int32, (1, n_pad), 1)
        s = jnp.where(col < n_valid, s, -1e30)

    # Exact row softmax: every row's full extent (all columns) is in this slab.
    row_max = jnp.max(s, axis=-1, keepdims=True)            # (tn, 1) f32
    z = s - row_max
    if use_bf16:
        z = z.astype(jnp.bfloat16)                          # bf16 EUP exp (~2x on v6e/v7x)
    e = jnp.exp(z)                                          # (tn, n_pad)

    # Softmax denominator on the MXU (idle for small c): den = e @ ones, f32 acc.
    ones_col = jnp.ones((n_pad, 1), dtype=e.dtype)
    den = jax.lax.dot_general(
        e, ones_col,
        dimension_numbers=(((1,), (0,)), ((), ())),
        preferred_element_type=jnp.float32)                  # (tn, 1) f32

    inv = pl.reciprocal(den, approx=True)                    # EUP slot
    inv = inv * (2.0 - den * inv)                            # one Newton step -> ~f32 exact

    # Fold gamma/den into the tiny (c, tn) LHS instead of scaling the (tn, n_pad)
    # probability slab: (tn, 1) column -> (1, tn) row via a native-tile XLU transpose.
    scale_col = gamma_ref[0] * inv                                         # (tn, 1)
    scale_row = jnp.transpose(
        jnp.broadcast_to(scale_col, (tile_n, 128)))[:1, :]                 # (1, tn)
    lhs = x_tile_f32 * scale_row                                           # (c, tn)
    if use_bf16:
        lhs = lhs.astype(jnp.bfloat16)

    # Contribution of these tn attention rows to gamma * (x @ softmax(x^T x)).
    o_ref[...] += jax.lax.dot_general(
        lhs, e,
        dimension_numbers=(((1,), (0,)), ((), ())),
        preferred_element_type=jnp.float32)


def _device_kind():
    try:
        return jax.devices()[0].device_kind.lower()
    except Exception:
        return ""


def _default_use_bf16():
    # bf16 VPU/EUP exists from v6e onward; v5e and older emulate it -> keep f32 there.
    kind = _device_kind()
    if any(tag in kind for tag in ("v2", "v3", "v4", "v5")):
        return False
    return True


def _vmem_capacity_bytes():
    try:
        info = pltpu.get_tpu_info()
        for attr in ("vmem_capacity_bytes", "vmem_bytes", "vmem_size_bytes"):
            val = getattr(info, attr, None)
            if val:
                return int(val)
    except Exception:
        pass
    kind = _device_kind()
    if "v7" in kind:
        return 64 << 20            # 64 MiB per TensorCore on v7x
    if any(tag in kind for tag in ("v2", "v3", "v4", "v5", "v6")):
        return 128 << 20
    return 64 << 20                # unknown chip: assume the small-VMEM part


def _round_up(v, m):
    return (v + m - 1) // m * m


def _plan_tiles(n, c, use_bf16, max_row_tile, vmem_capacity):
    """Pick (tile_n, n_pad, num_tiles, vmem_limit).

    tile_n is a multiple of 128 (>=128) chosen so that the live (tile_n, n_pad)
    slab temporaries fit the per-generation VMEM budget."""
    n_pad128 = _round_up(n, 128)
    e_bytes = 2 if use_bf16 else 4
    vmem_cap = int(0.75 * vmem_capacity)   # headroom for second buffers + compiler scratch

    # Tile-independent VMEM: double-buffered f32 x and o blocks, bf16 x copy,
    # (c, n_pad) f32 matmul partial, Mosaic internal scratch headroom.
    fixed = (4 * c * n_pad128 * 4
             + (c * n_pad128 * 2 if use_bf16 else 0)
             + c * n_pad128 * 4
             + (8 << 20))
    # Live per-tile-row slab bytes: s (f32) + one spare f32 slab + e.
    per_row = n_pad128 * (8 + e_bytes)
    avail = max(vmem_cap - fixed, 128 * per_row)

    tile_n = min(int(max_row_tile), n_pad128, avail // per_row)
    tile_n = max(128, (tile_n // 128) * 128)
    num_tiles = -(-n_pad128 // tile_n)
    # Shrink to the smallest 128-multiple that still covers N in num_tiles steps
    # (minimizes padding for awkward N).
    tile_n = _round_up(-(-n_pad128 // num_tiles), 128)
    n_pad = tile_n * num_tiles

    est = (4 * c * n_pad * 4
           + (c * n_pad * 2 if use_bf16 else 0)
           + c * n_pad * 4
           + tile_n * n_pad * (8 + e_bytes)
           + (8 << 20))
    vmem_limit = int(min(vmem_cap, max(32 << 20, est)))
    return tile_n, n_pad, num_tiles, vmem_limit


@functools.partial(jax.jit, static_argnames=("max_row_tile", "use_bf16"))
def channel_attention(inputs, gamma, *, max_row_tile=512, use_bf16=None):
    """inputs: (b, l, h, w, c) float32; gamma: (1,) float32.

    use_bf16=None auto-selects bf16 MXU/EUP operands (with f32 accumulation) on chips
    with native bf16 vector units (v6e/v7x) and the exact-f32 path otherwise."""
    b, l, h, w, c = inputs.shape
    n = l * h * w
    if use_bf16 is None:
        use_bf16 = _default_use_bf16()

    # Channel-first flatten, identical to permute+view in the torch module.  The
    # (c, N) layout keeps both matmul operands and the output lane-dense.
    x = jnp.transpose(inputs, (0, 4, 1, 2, 3)).reshape(b, c, n).astype(jnp.float32)
    gamma = jnp.asarray(gamma, jnp.float32).reshape((1,))

    tile_n, n_pad, num_tiles, vmem_limit = _plan_tiles(
        n, c, use_bf16, max_row_tile, _vmem_capacity_bytes())
    if n_pad > n:
        x = jnp.pad(x, ((0, 0), (0, 0), (0, n_pad - n)))

    kernel = functools.partial(_channel_attention_kernel,
                               tile_n=tile_n, n_valid=n, use_bf16=use_bf16)
    scratch_shapes = [pltpu.VMEM((c, n_pad), jnp.bfloat16)] if use_bf16 else []

    out_flat = pl.pallas_call(
        kernel,
        out_shape=jax.ShapeDtypeStruct((b, c, n_pad), jnp.float32),
        grid_spec=pltpu.PrefetchScalarGridSpec(
            num_scalar_prefetch=0,
            grid=(b, num_tiles),
            in_specs=[
                pl.BlockSpec(memory_space=pltpu.MemorySpace.SMEM),   # gamma scalar
                # x block: index_map ignores the tile axis -> fetched once per batch,
                # resident in VMEM across all row tiles (required by the alias below).
                pl.BlockSpec((None, c, n_pad), lambda i, j: (i, 0, 0)),
            ],
            out_specs=pl.BlockSpec((None, c, n_pad), lambda i, j: (i, 0, 0)),
            scratch_shapes=scratch_shapes,
        ),
        compiler_params=pltpu.CompilerParams(
            dimension_semantics=("parallel", "arbitrary"),
            vmem_limit_bytes=vmem_limit,
        ),
        # Reuse x's HBM buffer for the output: safe because x[i] is fetched exactly
        # once (at tile 0 of batch i) before o[i] is ever written back.
        input_output_aliases={1: 0},
    )(gamma, x)

    out_flat = out_flat[:, :, :n]
    return out_flat.reshape(b, c, l, h, w).transpose(0, 2, 3, 4, 1)


def channel_attention_ref(inputs, gamma):
    """Pure-JAX reference mirroring the PyTorch forward exactly."""
    b, l, h, w, c = inputs.shape
    n = l * h * w
    x = jnp.transpose(inputs, (0, 4, 1, 2, 3)).reshape(b, c, n)
    a = jax.nn.softmax(jnp.einsum("bcn,bcm->bnm", x, x), axis=-1)
    y = jnp.einsum("bcn,bnm->bcm", x, a)
    y = y.reshape(b, c, l, h, w).transpose(0, 2, 3, 4, 1)
    return y * gamma[0] + inputs


if __name__ == "__main__":
    key = jax.random.PRNGKey(0)
    k1, k2 = jax.random.split(key)

    # Deterministic parameter init: nn.Parameter(torch.ones(1)).
    gamma = jnp.ones((1,), dtype=jnp.float32)

    # Case 1: lane-aligned N (l*h*w = 256); single-tile and 2-tile paths.
    b, l, h, w, c = 2, 4, 8, 8, 8
    inputs = jax.random.normal(k1, (b, l, h, w, c), dtype=jnp.float32)
    ref = channel_attention_ref(inputs, gamma)

    out_f32 = jax.block_until_ready(channel_attention(inputs, gamma, use_bf16=False))
    out_f32_tiled = jax.block_until_ready(
        channel_attention(inputs, gamma, max_row_tile=128, use_bf16=False))
    assert out_f32.shape == inputs.shape
    assert jnp.allclose(out_f32, ref, atol=5e-4, rtol=5e-4)
    assert jnp.allclose(out_f32_tiled, ref, atol=5e-4, rtol=5e-4)

    # Auto precision (bf16 MXU/EUP on v6e/v7x, f32 elsewhere): looser parity.
    out_auto = jax.block_until_ready(channel_attention(inputs, gamma))
    assert jnp.allclose(out_auto, ref, atol=1e-1, rtol=1e-1)

    # Case 2: awkward N (=105) and c not a multiple of 8 -> exercises pad + mask path.
    b2, l2, h2, w2, c2 = 1, 3, 5, 7, 5
    inputs2 = jax.random.normal(k2, (b2, l2, h2, w2, c2), dtype=jnp.float32)
    ref2 = channel_attention_ref(inputs2, gamma)
    out2_f32 = jax.block_until_ready(channel_attention(inputs2, gamma, use_bf16=False))
    assert out2_f32.shape == inputs2.shape
    assert jnp.allclose(out2_f32, ref2, atol=5e-4, rtol=5e-4)
    out2_auto = jax.block_until_ready(channel_attention(inputs2, gamma))
    assert jnp.allclose(out2_auto, ref2, atol=1e-1, rtol=1e-1)

    print("KERNEL_OK")
</pallas_src>

<mosaic_0001>
module attributes {stable_mosaic.version = 11 : i64} {
  func.func @_channel_attention_kernel(%arg0: i32, %arg1: i32, %arg2: memref<1xf32, #tpu.memory_space<smem>>, %arg3: memref<1x8x256xf32, #tpu.memory_space<vmem>>, %arg4: memref<1x8x256xf32, #tpu.memory_space<vmem>>) attributes {dimension_semantics = [#tpu.dimension_semantics<parallel>, #tpu.dimension_semantics<arbitrary>], iteration_bounds = array<i64: 2, 1>, scalar_prefetch = 0 : i64, scratch_operands = 0 : i64, tpu.core_type = #tpu.core_type<tc>, window_params = [{transform_indices = @transform_0, window_bounds = array<i64: 1>}, {transform_indices = @transform_1, window_bounds = array<i64: 1, 8, 256>}, {transform_indices = @transform_2, window_bounds = array<i64: 1, 8, 256>}]} {
    %c0_i32 = arith.constant 0 : i32
    %0 = arith.cmpi eq, %arg1, %c0_i32 : i32
    %1 = arith.extui %0 : i1 to i32
    %c0_i32_0 = arith.constant 0 : i32
    %2 = arith.cmpi ne, %1, %c0_i32_0 : i32
    scf.if %2 {
      %c0_17 = arith.constant 0 : index
      %c0_18 = arith.constant 0 : index
      %c0_19 = arith.constant 0 : index
      %39 = vector.load %arg3[%c0_17, %c0_18, %c0_19] : memref<1x8x256xf32, #tpu.memory_space<vmem>>, vector<1x8x256xf32>
      %40 = vector.shape_cast %39 : vector<1x8x256xf32> to vector<8x256xf32>
      %c0_20 = arith.constant 0 : index
      %c0_21 = arith.constant 0 : index
      %c0_22 = arith.constant 0 : index
      %41 = vector.load %arg4[%c0_20, %c0_21, %c0_22] : memref<1x8x256xf32, #tpu.memory_space<vmem>>, vector<1x8x256xf32>
      %42 = vector.shape_cast %41 : vector<1x8x256xf32> to vector<8x256xf32>
      %43 = vector.shape_cast %40 : vector<8x256xf32> to vector<1x8x256xf32>
      tpu.vector_store %arg4[%c0_20, %c0_21, %c0_22], %43 {strides = array<i32>} : memref<1x8x256xf32, #tpu.memory_space<vmem>>, vector<1x8x256xf32>,
    } else {
    }
    %c256_i32 = arith.constant 256 : i32
    %3 = arith.muli %arg1, %c256_i32 : i32
    %4 = tpu.assume_multiple %3, 128 : i32
    %c0 = arith.constant 0 : index
    %c0_1 = arith.constant 0 : index
    %5 = arith.index_cast %4 : i32 to index
    %6 = vector.load %arg3[%c0, %c0_1, %5] : memref<1x8x256xf32, #tpu.memory_space<vmem>>, vector<1x8x256xf32>
    %7 = vector.shape_cast %6 : vector<1x8x256xf32> to vector<8x256xf32>
    %c0_2 = arith.constant 0 : index
    %c0_3 = arith.constant 0 : index
    %c0_4 = arith.constant 0 : index
    %8 = vector.load %arg3[%c0_2, %c0_3, %c0_4] : memref<1x8x256xf32, #tpu.memory_space<vmem>>, vector<1x8x256xf32>
    %9 = vector.shape_cast %8 : vector<1x8x256xf32> to vector<8x256xf32>
    %cst = arith.constant dense<0.000000e+00> : vector<256x256xf32>
    %10 = tpu.matmul %7, %9, %cst {dimension_numbers = #tpu.dot_dimension_numbers<[0], [0], [1], [1], [0, 1, 1, 1], [], []>} : vector<8x256xf32>, vector<8x256xf32>, vector<256x256xf32> -> vector<256x256xf32>
    %cst_5 = arith.constant dense<0xFF800000> : vector<256xf32>
    %11 = vector.multi_reduction <maximumf>, %10, %cst_5 [1] : vector<256x256xf32> to vector<256xf32>
    %12 = vector.shape_cast %11 : vector<256xf32> to vector<256x1xf32>
    %13 = vector.broadcast %12 : vector<256x1xf32> to vector<256x256xf32>
    %14 = arith.subf %10, %13 : vector<256x256xf32>
    %15 = math.exp %14 : vector<256x256xf32>
    %cst_6 = arith.constant 1.000000e+00 : f32
    %16 = vector.broadcast %cst_6 : f32 to vector<256x1xf32>
    %cst_7 = arith.constant dense<0.000000e+00> : vector<256x1xf32>
    %17 = tpu.matmul %15, %16, %cst_7 {dimension_numbers = #tpu.dot_dimension_numbers<[1], [0], [0], [1], [0, 0, 1, 1], [], []>} : vector<256x256xf32>, vector<256x1xf32>, vector<256x1xf32> -> vector<256x1xf32>
    %18 = tpu.reciprocal %17 {approx = true} : vector<256x1xf32> -> vector<256x1xf32>
    %19 = arith.mulf %17, %18 : vector<256x1xf32>
    %cst_8 = arith.constant 2.000000e+00 : f32
    %20 = vector.broadcast %cst_8 : f32 to vector<256x1xf32>
    %21 = arith.subf %20, %19 : vector<256x1xf32>
    %22 = arith.mulf %18, %21 : vector<256x1xf32>
    %c0_9 = arith.constant 0 : index
    %23 = memref.load %arg2[%c0_9] : memref<1xf32, #tpu.memory_space<smem>>
    %24 = vector.broadcast %23 : f32 to vector<256x1xf32>
    %25 = arith.mulf %24, %22 : vector<256x1xf32>
    %26 = vector.shape_cast %25 : vector<256x1xf32> to vector<256x1xf32>
    %27 = vector.broadcast %26 : vector<256x1xf32> to vector<256x128xf32>
    %28 = tpu.transpose %27, [1, 0] : vector<256x128xf32> -> vector<128x256xf32>
    %29 = vector.extract_strided_slice %28 {offsets = [0, 0], sizes = [1, 256], strides = [1, 1]} : vector<128x256xf32> to vector<1x256xf32>
    %30 = vector.broadcast %29 : vector<1x256xf32> to vector<8x256xf32>
    %31 = arith.mulf %7, %30 : vector<8x256xf32>
    %c0_10 = arith.constant 0 : index
    %c0_11 = arith.constant 0 : index
    %c0_12 = arith.constant 0 : index
    %32 = vector.load %arg4[%c0_10, %c0_11, %c0_12] : memref<1x8x256xf32, #tpu.memory_space<vmem>>, vector<1x8x256xf32>
    %33 = vector.shape_cast %32 : vector<1x8x256xf32> to vector<8x256xf32>
    %cst_13 = arith.constant dense<0.000000e+00> : vector<8x256xf32>
    %34 = tpu.matmul %31, %15, %cst_13 {dimension_numbers = #tpu.dot_dimension_numbers<[1], [0], [0], [1], [0, 0, 1, 1], [], []>} : vector<8x256xf32>, vector<256x256xf32>, vector<8x256xf32> -> vector<8x256xf32>
    %35 = arith.addf %33, %34 : vector<8x256xf32>
    %c0_14 = arith.constant 0 : index
    %c0_15 = arith.constant 0 : index
    %c0_16 = arith.constant 0 : index
    %36 = vector.load %arg4[%c0_14, %c0_15, %c0_16] : memref<1x8x256xf32, #tpu.memory_space<vmem>>, vector<1x8x256xf32>
    %37 = vector.shape_cast %36 : vector<1x8x256xf32> to vector<8x256xf32>
    %38 = vector.shape_cast %35 : vector<8x256xf32> to vector<1x8x256xf32>
    tpu.vector_store %arg4[%c0_14, %c0_15, %c0_16], %38 {strides = array<i32>} : memref<1x8x256xf32, #tpu.memory_space<vmem>>, vector<1x8x256xf32>,
    return
  }
  func.func @transform_0(%arg0: i32, %arg1: i32) -> i32 {
    %c0_i32 = arith.constant 0 : i32
    %c0_i32_0 = arith.constant 0 : i32
    return %c0_i32 : i32
  }
  func.func @transform_1(%arg0: i32, %arg1: i32) -> (i32, i32, i32) {
    %c0_i32 = arith.constant 0 : i32
    %c0_i32_0 = arith.constant 0 : i32
    %c0_i32_1 = arith.constant 0 : i32
    return %arg0, %c0_i32, %c0_i32_0 : i32, i32, i32
  }
  func.func @transform_2(%arg0: i32, %arg1: i32) -> (i32, i32, i32) {
    %c0_i32 = arith.constant 0 : i32
    %c0_i32_0 = arith.constant 0 : i32
    %c0_i32_1 = arith.constant 0 : i32
    return %arg0, %c0_i32, %c0_i32_0 : i32, i32, i32
  }
}

</mosaic_0001>

<llo_original>
// kernel: channel_attention.1
$region0: #{channel_attention.1}
  #allocation0 [shape = 'u32[]', space=smem, size = 0x4, offset = 0x4, fixed_abs, tag = 'smem constant byte address 0x4 - core index']
  #allocation1 [shape = 'u32[144,128]{1,0:T(1,128)}', space=vmem, size = 0x12000, scoped, tag = 'internal scratch']
  #allocation2 [shape = 'f32[1]{0:T(128)S(6)}', space=smem, size = 0x200, scoped, tag = 'scoped memory for channel_attention.1']
  %s0 = inlined_call_operand.<no memory space> [shape: f32[1], index: 0, kind: input, shape index: {}]
  %s1 = inlined_call_operand.vmem [shape: f32[2,8,256], index: 1, kind: input, shape index: {}, may-alias: {1,2}]
  %s2 = inlined_call_operand.vmem [shape: f32[2,8,256], index: 2, kind: output, shape index: {}, may-alias: {1,2}]
  %s3 = sld [smem:[#allocation0]]
  $region45: #{channel_attention.1} parent=0
    _
  %s5 = ssub.s32 1, %s3
  %s6 = scalar_select 0, %s5, %s3
  %7 = sst [smem:[#allocation2]] %s0
  loop: start=0, step=1, limit=4
  $region2: #{channel_attention.1} parent=0 // loop_pre_header
    _
  $region3: #{channel_attention.1} parent=0 // loop_header
    %s9 = sphi 0, %s13
    %p10 = scmp.ge.s32.totalorder %s9, 4
    %s16 = sphi 0, %s28
    %s17 = sphi 0, %s24
    %s18 = sphi 0, %s16
    %s19 = sphi 0, %s17
    %s20 = sphi 0, %s18
    %s21 = sphi 0, %s19
    %s29 = sphi 0, %s29
    %s31 = sphi 0, %s29
    %s32 = sphi 0, %s31
    %s46 = sphi 0, %s32
    %s52 = sphi 0, %s54
    %s55 = sphi 0, %s52
    %s56 = sphi 0, %s55
    %s72 = sphi 0, %s56
    %s78 = sphi 0, %s80
    %s81 = sphi 0, %s78
    %s82 = sphi 0, %s81
    %s98 = sphi 0, %s82
  $region4: #{channel_attention.1} parent=0 // loop_header_branch
    %12 = sbr.rel (%p10) target = $region8
  $region5: #{channel_attention.1} parent=0 // loop_body
    %s14 = ssub.s32 %s9, 1
    %s15 = ssub.s32 %s9, 2
    %s22 = sadd.s32 1, %s17
    %p23 = scmp.ge.s32.totalorder %s22, 1
    %s24 = scalar_select %p23, 0, %s22
    %s25 = sadd.s32 1, %s16
    %s26 = scalar_select %p23, %s25, %s16
    %p27 = scmp.ge.s32.totalorder %s26, 2
    %s28 = scalar_select %p27, 0, %s26
    %s30 = sadd.s32 %s29, 1
    %p33 = scmp.eq.s32.totalorder %s9, 1
    %p34 = scmp.ne.s32.totalorder %s29, %s31
    %p35 = scmp.eq.s32.totalorder %s9, 0
    %p36 = por %p34, %p35
    %p37 = scmp.ne.s32.totalorder %s29, %s31
    %p38 = scmp.eq.s32.totalorder %s14, 1
    %p39 = por %p37, %p38
    %p40 = scmp.ne.s32.totalorder %s31, %s32
    %p41 = scmp.eq.s32.totalorder %s14, 0
    %p42 = por %p40, %p41
    %p43 = scmp.ne.s32.totalorder %s31, %s32
    %p44 = scmp.eq.s32.totalorder %s15, 1
    %p45 = por %p43, %p44
    %p47 = scmp.ne.s32.totalorder %s32, %s46
    %p48 = scmp.eq.s32.totalorder %s15, 0
    %p49 = por %p47, %p48
    %s50 = ssub.s32 %s16, %s28
    %p51 = scmp.eq.s32.totalorder %s50, 0
    %s53 = sadd.s32 %s52, 1
    %s54 = scalar_select %p51, %s52, %s53
    %p57 = pneg %p51
    %p58 = scmp.eq.s32.totalorder %s9, 1
    %p59 = por %p57, %p58
    %p60 = scmp.ne.s32.totalorder %s52, %s55
    %p61 = scmp.eq.s32.totalorder %s9, 0
    %p62 = por %p60, %p61
    %p63 = scmp.ne.s32.totalorder %s52, %s55
    %p64 = scmp.eq.s32.totalorder %s14, 1
    %p65 = por %p63, %p64
    %p66 = scmp.ne.s32.totalorder %s55, %s56
    %p67 = scmp.eq.s32.totalorder %s14, 0
    %p68 = por %p66, %p67
    %p69 = scmp.ne.s32.totalorder %s55, %s56
    %p70 = scmp.eq.s32.totalorder %s15, 1
    %p71 = por %p69, %p70
    %p73 = scmp.ne.s32.totalorder %s56, %s72
    %p74 = scmp.eq.s32.totalorder %s15, 0
    %p75 = por %p73, %p74
    %s76 = ssub.s32 %s16, %s28
    %p77 = scmp.eq.s32.totalorder %s76, 0
    %s79 = sadd.s32 %s78, 1
    %s80 = scalar_select %p77, %s78, %s79
    %p83 = pneg %p77
    %p84 = scmp.eq.s32.totalorder %s9, 1
    %p85 = por %p83, %p84
    %p86 = scmp.ne.s32.totalorder %s78, %s81
    %p87 = scmp.eq.s32.totalorder %s9, 0
    %p88 = por %p86, %p87
    %p89 = scmp.ne.s32.totalorder %s78, %s81
    %p90 = scmp.eq.s32.totalorder %s14, 1
    %p91 = por %p89, %p90
    %p92 = scmp.ne.s32.totalorder %s81, %s82
    %p93 = scmp.eq.s32.totalorder %s14, 0
    %p94 = por %p92, %p93
    %p95 = scmp.ne.s32.totalorder %s81, %s82
    %p96 = scmp.eq.s32.totalorder %s15, 1
    %p97 = por %p95, %p96
    %p99 = scmp.ne.s32.totalorder %s82, %s98
    %p100 = scmp.eq.s32.totalorder %s15, 0
    %p101 = por %p99, %p100
    %p102 = scmp.le.s32.totalorder 1, %s9
    %p103 = scmp.lt.s32.totalorder %s9, 3
    %p104 = pnand %p102, %p103
    %p105 = pneg %p104
    // Predicated region
    $region9: #{channel_attention.1} parent=5 // pred_check
      _
    $region10: #{channel_attention.1} parent=5 // pred_check_branch
      %107 = sbr.rel (%p104) target = $region12
    $region11: #{channel_attention.1} parent=5 // pred_region
      %s108 = ssub.s32 %s9, 1
      // Predicated region
      $region13: #{channel_attention.1} parent=11 // pred_check
        %p109 = pneg %p42
      $region14: #{channel_attention.1} parent=11 // pred_check_branch
        %111 = sbr.rel (%p109) target = $region16
      $region15: #{channel_attention.1} parent=11 // pred_region
        _
      $region16: #{channel_attention.1} parent=11 // pred_fallthru
        _
    $region12: #{channel_attention.1} parent=5 // pred_fallthru
      _
    %p112 = scmp.lt.s32.totalorder %s9, 2
    // Predicated region
    $region17: #{channel_attention.1} parent=5 // pred_check
      %p113 = pneg %p112
    $region18: #{channel_attention.1} parent=5 // pred_check_branch
      %115 = sbr.rel (%p113) target = $region20
    $region19: #{channel_attention.1} parent=5 // pred_region
      // Predicated region
      $region21: #{channel_attention.1} parent=19 // pred_check
        %p116 = pneg %p62
      $region22: #{channel_attention.1} parent=19 // pred_check_branch
        %118 = sbr.rel (%p116) target = $region24
      $region23: #{channel_attention.1} parent=19 // pred_region
        %p119 = scmp.lt.s32.totalorder %s16, 1
        %s120 = scalar_select %p119, %s16, 1
        %s121 = smul.addr %s120, 2
        %s122 = smul.addr %s121, 8
        %s123 = scalar_lea.vmem %s1, %s122
      $region24: #{channel_attention.1} parent=19 // pred_fallthru
        _
    $region20: #{channel_attention.1} parent=5 // pred_fallthru
      _
    %p124 = scmp.le.s32.totalorder 1, %s9
    %p125 = scmp.lt.s32.totalorder %s9, 3
    %p126 = pnand %p124, %p125
    %p127 = pneg %p126
    // Predicated region
    $region25: #{channel_attention.1} parent=5 // pred_check
      _
    $region26: #{channel_attention.1} parent=5 // pred_check_branch
      %129 = sbr.rel (%p126) target = $region28
    $region27: #{channel_attention.1} parent=5 // pred_region
      %s130 = ssub.s32 %s9, 1
      %p131 = pneg %p42
      %p132 = pneg %p39
      %p133 = scmp.lt.s32.totalorder %s18, 1
      %s134 = scalar_select %p133, %s18, 1
      %s135 = smul.addr %s134, 2
      %s136 = smul.addr %s135, 8
      %s137 = scalar_lea.vmem %s1, %s136
      %p138 = pneg %p68
      %p139 = pneg %p65
      %p140 = pneg %p94
      %p141 = pneg %p91
      %p142 = scmp.lt.s32.totalorder %s18, 1
      %s143 = scalar_select %p142, %s18, 1
      %s144 = smul.addr %s143, 2
      %s145 = smul.addr %s144, 8
      %s146 = scalar_lea.vmem %s2, %s145
      %p147 = scmp.lt.s32.totalorder %s18, 1
      %s148 = scalar_select %p147, %s18, 1
      %s149 = smul.addr %s148, 2
      %s150 = smul.addr %s149, 8
      %s151 = scalar_lea.vmem %s1, %s150
      %p152 = scmp.lt.s32.totalorder %s18, 1
      %s153 = scalar_select %p152, %s18, 1
      %s154 = smul.addr %s153, 2
      %s155 = smul.addr %s154, 8
      %s156 = scalar_lea.vmem %s2, %s155
      %p157 = scmp.eq.s32.totalorder %s19, 0
      // Predicated region
      $region29: #{channel_attention.1} parent=27 // pred_check
        %p158 = pneg %p157
      $region30: #{channel_attention.1} parent=27 // pred_check_branch
        %160 = sbr.rel (%p158) target = $region32
      $region31: #{channel_attention.1} parent=27 // pred_region
        %v161 = vld [vmem:[%s151] sm:$0xff]
        %v162 = vld [vmem:[%s151 + $0x8] sm:$0xff]
        %163 = vst [vmem:[%s156] sm:$0xff] %v161
        %164 = vst [vmem:[%s156 + $0x8] sm:$0xff] %v162
      $region32: #{channel_attention.1} parent=27 // pred_fallthru
        _
      %s165 = smul.u32 %s19, 256
      %s166 = sshra.s32 %s165, 7
      %s167 = sand.u32 %s165, 127
      %s168 = smul.addr %s166, 8
      %s169 = scalar_lea.vmem %s151, %s168
      %v170 = vld [vmem:[%s169] sm:$0xff]
      %v171 = vld [vmem:[%s169 + $0x8] sm:$0xff]
      %v172 = vld [vmem:[%s151] sm:$0xff]
      %v173 = vld [vmem:[%s151 + $0x8] sm:$0xff]
      %174 = vxpose.xlu0.b32.start [1/16] %v170, 128
      %175 = vxpose.xlu0.b32.cont [2/16] 0.0, 128
      %176 = vxpose.xlu0.b32.cont [3/16] 0.0, 128
      %177 = vxpose.xlu0.b32.cont [4/16] 0.0, 128
      %178 = vxpose.xlu0.b32.cont [5/16] 0.0, 128
      %179 = vxpose.xlu0.b32.cont [6/16] 0.0, 128
      %180 = vxpose.xlu0.b32.cont [7/16] 0.0, 128
      %181 = vxpose.xlu0.b32.cont [8/16] 0.0, 128
      %182 = vxpose.xlu0.b32.cont [9/16] 0.0, 128
      %183 = vxpose.xlu0.b32.cont [10/16] 0.0, 128
      %184 = vxpose.xlu0.b32.cont [11/16] 0.0, 128
      %185 = vxpose.xlu0.b32.cont [12/16] 0.0, 128
      %186 = vxpose.xlu0.b32.cont [13/16] 0.0, 128
      %187 = vxpose.xlu0.b32.cont [14/16] 0.0, 128
      %188 = vxpose.xlu0.b32.cont [15/16] 0.0, 128
      %189 = vxpose.xlu0.b32.end [16/16] 0.0, 128
      %v190 = vpop.trf.xlu0
      %v191 = vpop.trf.xlu0
      %v192 = vpop.trf.xlu0
      %v193 = vpop.trf.xlu0
      %v194 = vpop.trf.xlu0
      %v195 = vpop.trf.xlu0
      %v196 = vpop.trf.xlu0
      %v197 = vpop.trf.xlu0
      %v198 = vpop.trf.xlu0
      %v199 = vpop.trf.xlu0
      %v200 = vpop.trf.xlu0
      %v201 = vpop.trf.xlu0
      %v202 = vpop.trf.xlu0
      %v203 = vpop.trf.xlu0
      %v204 = vpop.trf.xlu0
      %v205 = vpop.trf.xlu0
      %206 = vxpose.xlu0.b32.start [1/16] %v171, 128
      %207 = vxpose.xlu0.b32.cont [2/16] 0.0, 128
      %208 = vxpose.xlu0.b32.cont [3/16] 0.0, 128
      %209 = vxpose.xlu0.b32.cont [4/16] 0.0, 128
      %210 = vxpose.xlu0.b32.cont [5/16] 0.0, 128
      %211 = vxpose.xlu0.b32.cont [6/16] 0.0, 128
      %212 = vxpose.xlu0.b32.cont [7/16] 0.0, 128
      %213 = vxpose.xlu0.b32.cont [8/16] 0.0, 128
      %214 = vxpose.xlu0.b32.cont [9/16] 0.0, 128
      %215 = vxpose.xlu0.b32.cont [10/16] 0.0, 128
      %216 = vxpose.xlu0.b32.cont [11/16] 0.0, 128
      %217 = vxpose.xlu0.b32.cont [12/16] 0.0, 128
      %218 = vxpose.xlu0.b32.cont [13/16] 0.0, 128
      %219 = vxpose.xlu0.b32.cont [14/16] 0.0, 128
      %220 = vxpose.xlu0.b32.cont [15/16] 0.0, 128
      %221 = vxpose.xlu0.b32.end [16/16] 0.0, 128
      %v222 = vpop.trf.xlu0
      %v223 = vpop.trf.xlu0
      %v224 = vpop.trf.xlu0
      %v225 = vpop.trf.xlu0
      %v226 = vpop.trf.xlu0
      %v227 = vpop.trf.xlu0
      %v228 = vpop.trf.xlu0
      %v229 = vpop.trf.xlu0
      %v230 = vpop.trf.xlu0
      %v231 = vpop.trf.xlu0
      %v232 = vpop.trf.xlu0
      %v233 = vpop.trf.xlu0
      %v234 = vpop.trf.xlu0
      %v235 = vpop.trf.xlu0
      %v236 = vpop.trf.xlu0
      %v237 = vpop.trf.xlu0
      %vm238 = vcmask 64512
      %v240 = vsel %vm238, %v190, 0
      %v243 = vsel %vm238, %v191, 0
      %v246 = vsel %vm238, %v192, 0
      %v249 = vsel %vm238, %v193, 0
      %v252 = vsel %vm238, %v194, 0
      %v255 = vsel %vm238, %v195, 0
      %v258 = vsel %vm238, %v196, 0
      %v261 = vsel %vm238, %v197, 0
      %v264 = vsel %vm238, %v198, 0
      %v267 = vsel %vm238, %v199, 0
      %v270 = vsel %vm238, %v200, 0
      %v273 = vsel %vm238, %v201, 0
      %v276 = vsel %vm238, %v202, 0
      %v279 = vsel %vm238, %v203, 0
      %v282 = vsel %vm238, %v204, 0
      %v285 = vsel %vm238, %v205, 0
      %v288 = vsel %vm238, %v222, 0
      %v291 = vsel %vm238, %v223, 0
      %v294 = vsel %vm238, %v224, 0
      %v297 = vsel %vm238, %v225, 0
      %v300 = vsel %vm238, %v226, 0
      %v303 = vsel %vm238, %v227, 0
      %v306 = vsel %vm238, %v228, 0
      %v309 = vsel %vm238, %v229, 0
      %v312 = vsel %vm238, %v230, 0
      %v315 = vsel %vm238, %v231, 0
      %v318 = vsel %vm238, %v232, 0
      %v321 = vsel %vm238, %v233, 0
      %v324 = vsel %vm238, %v234, 0
      %v327 = vsel %vm238, %v235, 0
      %v330 = vsel %vm238, %v236, 0
      %v333 = vsel %vm238, %v237, 0
      %335 = vmatprep.subr.mxu0 %v173
      %336 = vmatpush1.msra.mxu0 %v172
      %337 = vmatprep.subr.mxu0 0.0
      %338 = vmatpush1.msra.mxu0 0.0
      %339 = vmatprep.subr.mxu0 0.0
      %340 = vmatpush1.msra.mxu0 0.0
      %341 = vmatprep.subr.mxu0 0.0
      %342 = vmatpush1.msra.mxu0 0.0
      %343 = vmatprep.subr.mxu0 0.0
      %344 = vmatpush1.msra.mxu0 0.0
      %345 = vmatprep.subr.mxu0 0.0
      %346 = vmatpush1.msra.mxu0 0.0
      %347 = vmatprep.subr.mxu0 0.0
      %348 = vmatpush1.msra.mxu0 0.0
      %349 = vmatprep.subr.mxu0 0.0
      %350 = vmatpush1.msra.mxu0 0.0
      %351 = vmatprep.subr.mxu0 0.0
      %352 = vmatpush1.msra.mxu0 0.0
      %353 = vmatprep.subr.mxu0 0.0
      %354 = vmatpush1.msra.mxu0 0.0
      %355 = vmatprep.subr.mxu0 0.0
      %356 = vmatpush1.msra.mxu0 0.0
      %357 = vmatprep.subr.mxu0 0.0
      %358 = vmatpush1.msra.mxu0 0.0
      %359 = vmatprep.subr.mxu0 0.0
      %360 = vmatpush1.msra.mxu0 0.0
      %361 = vmatprep.subr.mxu0 0.0
      %362 = vmatpush1.msra.mxu0 0.0
      %363 = vmatprep.subr.mxu0 0.0
      %364 = vmatpush1.msra.mxu0 0.0
      %365 = vmatprep.subr.mxu0 0.0
      %366 = vmatpush1.msra.mxu0 0.0
      %367 = vmatprep.subr.mxu0 0.0
      %368 = vmatpush1.msra.mxu0 0.0
      %369 = vmatprep.subr.mxu0 0.0
      %370 = vmatpush1.msra.mxu0 0.0
      %371 = vmatprep.subr.mxu0 0.0
      %372 = vmatpush1.msra.mxu0 0.0
      %373 = vmatprep.subr.mxu0 0.0
      %374 = vmatpush1.msra.mxu0 0.0
      %375 = vmatprep.subr.mxu0 0.0
      %376 = vmatpush1.msra.mxu0 0.0
      %377 = vmatprep.subr.mxu0 0.0
      %378 = vmatpush1.msra.mxu0 0.0
      %379 = vmatprep.subr.mxu0 0.0
      %380 = vmatpush1.msra.mxu0 0.0
      %381 = vmatprep.subr.mxu0 0.0
      %382 = vmatpush1.msra.mxu0 0.0
      %383 = vmatprep.subr.mxu0 0.0
      %384 = vmatpush1.msra.mxu0 0.0
      %385 = vmatprep.subr.mxu0 0.0
      %386 = vmatpush1.msra.mxu0 0.0
      %387 = vmatprep.subr.mxu0 0.0
      %388 = vmatpush1.msra.mxu0 0.0
      %389 = vmatprep.subr.mxu0 0.0
      %390 = vmatpush1.msra.mxu0 0.0
      %391 = vmatprep.subr.mxu0 0.0
      %392 = vmatpush1.msra.mxu0 0.0
      %393 = vmatprep.subr.mxu0 0.0
      %394 = vmatpush1.msra.mxu0 0.0
      %395 = vmatprep.subr.mxu0 0.0
      %396 = vmatpush1.msra.mxu0 0.0
      %397 = vmatprep.subr.mxu0 0.0
      %398 = vmatpush1.msra.mxu0 0.0
      %399 = vmatprep.mubr.f32.mxu0 0.0
      %400 = vmatmul.mubr.f32.gmra.mrb[0].mxu0 %v240
      %v401 = vpop.f32.mrb[0].mxu0
      %v402 = vadd.f32 0.0, %v401
      %v403 = vpop.f32.mrb[0].mxu0
      %v404 = vadd.f32 0.0, %v403
      %405 = vmatprep.mubr.f32.mxu0 0.0
      %406 = vmatmul.mubr.f32.gmra.mrb[0].mxu0 %v243
      %v407 = vpop.f32.mrb[0].mxu0
      %v408 = vadd.f32 0.0, %v407
      %v409 = vpop.f32.mrb[0].mxu0
      %v410 = vadd.f32 0.0, %v409
      %411 = vmatprep.mubr.f32.mxu0 0.0
      %412 = vmatmul.mubr.f32.gmra.mrb[0].mxu0 %v246
      %v413 = vpop.f32.mrb[0].mxu0
      %v414 = vadd.f32 0.0, %v413
      %v415 = vpop.f32.mrb[0].mxu0
      %v416 = vadd.f32 0.0, %v415
      %417 = vmatprep.mubr.f32.mxu0 0.0
      %418 = vmatmul.mubr.f32.gmra.mrb[0].mxu0 %v249
      %v419 = vpop.f32.mrb[0].mxu0
      %v420 = vadd.f32 0.0, %v419
      %v421 = vpop.f32.mrb[0].mxu0
      %v422 = vadd.f32 0.0, %v421
      %423 = vmatprep.mubr.f32.mxu0 0.0
      %424 = vmatmul.mubr.f32.gmra.mrb[0].mxu0 %v252
      %v425 = vpop.f32.mrb[0].mxu0
      %v426 = vadd.f32 0.0, %v425
      %v427 = vpop.f32.mrb[0].mxu0
      %v428 = vadd.f32 0.0, %v427
      %429 = vmatprep.mubr.f32.mxu0 0.0
      %430 = vmatmul.mubr.f32.gmra.mrb[0].mxu0 %v255
      %v431 = vpop.f32.mrb[0].mxu0
      %v432 = vadd.f32 0.0, %v431
      %v433 = vpop.f32.mrb[0].mxu0
      %v434 = vadd.f32 0.0, %v433
      %435 = vmatprep.mubr.f32.mxu0 0.0
      %436 = vmatmul.mubr.f32.gmra.mrb[0].mxu0 %v258
      %v437 = vpop.f32.mrb[0].mxu0
      %v438 = vadd.f32 0.0, %v437
      %v439 = vpop.f32.mrb[0].mxu0
      %v440 = vadd.f32 0.0, %v439
      %441 = vmatprep.mubr.f32.mxu0 0.0
      %442 = vmatmul.mubr.f32.gmra.mrb[0].mxu0 %v261
      %v443 = vpop.f32.mrb[0].mxu0
      %v444 = vadd.f32 0.0, %v443
      %v445 = vpop.f32.mrb[0].mxu0
      %v446 = vadd.f32 0.0, %v445
      %447 = vmatprep.mubr.f32.mxu0 0.0
      %448 = vmatmul.mubr.f32.gmra.mrb[0].mxu0 %v264
      %v449 = vpop.f32.mrb[0].mxu0
      %v450 = vadd.f32 0.0, %v449
      %v451 = vpop.f32.mrb[0].mxu0
      %v452 = vadd.f32 0.0, %v451
      %453 = vmatprep.mubr.f32.mxu0 0.0
      %454 = vmatmul.mubr.f32.gmra.mrb[0].mxu0 %v267
      %v455 = vpop.f32.mrb[0].mxu0
      %v456 = vadd.f32 0.0, %v455
      %v457 = vpop.f32.mrb[0].mxu0
      %v458 = vadd.f32 0.0, %v457
      %459 = vmatprep.mubr.f32.mxu0 0.0
      %460 = vmatmul.mubr.f32.gmra.mrb[0].mxu0 %v270
      %v461 = vpop.f32.mrb[0].mxu0
      %v462 = vadd.f32 0.0, %v461
      %v463 = vpop.f32.mrb[0].mxu0
      %v464 = vadd.f32 0.0, %v463
      %465 = vmatprep.mubr.f32.mxu0 0.0
      %466 = vmatmul.mubr.f32.gmra.mrb[0].mxu0 %v273
      %v467 = vpop.f32.mrb[0].mxu0
      %v468 = vadd.f32 0.0, %v467
      %v469 = vpop.f32.mrb[0].mxu0
      %v470 = vadd.f32 0.0, %v469
      %471 = vmatprep.mubr.f32.mxu0 0.0
      %472 = vmatmul.mubr.f32.gmra.mrb[0].mxu0 %v276
      %v473 = vpop.f32.mrb[0].mxu0
      %v474 = vadd.f32 0.0, %v473
      %v475 = vpop.f32.mrb[0].mxu0
      %v476 = vadd.f32 0.0, %v475
      %477 = vmatprep.mubr.f32.mxu0 0.0
      %478 = vmatmul.mubr.f32.gmra.mrb[0].mxu0 %v279
      %v479 = vpop.f32.mrb[0].mxu0
      %v480 = vadd.f32 0.0, %v479
      %v481 = vpop.f32.mrb[0].mxu0
      %v482 = vadd.f32 0.0, %v481
      %483 = vmatprep.mubr.f32.mxu0 0.0
      %484 = vmatmul.mubr.f32.gmra.mrb[0].mxu0 %v282
      %v485 = vpop.f32.mrb[0].mxu0
      %v486 = vadd.f32 0.0, %v485
      %v487 = vpop.f32.mrb[0].mxu0
      %v488 = vadd.f32 0.0, %v487
      %489 = vmatprep.mubr.f32.mxu0 0.0
      %490 = vmatmul.mubr.f32.gmra.mrb[0].mxu0 %v285
      %v491 = vpop.f32.mrb[0].mxu0
      %v492 = vadd.f32 0.0, %v491
      %v493 = vpop.f32.mrb[0].mxu0
      %v494 = vadd.f32 0.0, %v493
      %495 = vmatprep.mubr.f32.mxu0 0.0
      %496 = vmatmul.mubr.f32.gmra.mrb[0].mxu0 %v288
      %v497 = vpop.f32.mrb[0].mxu0
      %v498 = vadd.f32 0.0, %v497
      %v499 = vpop.f32.mrb[0].mxu0
      %v500 = vadd.f32 0.0, %v499
      %501 = vmatprep.mubr.f32.mxu0 0.0
      %502 = vmatmul.mubr.f32.gmra.mrb[0].mxu0 %v291
      %v503 = vpop.f32.mrb[0].mxu0
      %v504 = vadd.f32 0.0, %v503
      %v505 = vpop.f32.mrb[0].mxu0
      %v506 = vadd.f32 0.0, %v505
      %507 = vmatprep.mubr.f32.mxu0 0.0
      %508 = vmatmul.mubr.f32.gmra.mrb[0].mxu0 %v294
      %v509 = vpop.f32.mrb[0].mxu0
      %v510 = vadd.f32 0.0, %v509
      %v511 = vpop.f32.mrb[0].mxu0
      %v512 = vadd.f32 0.0, %v511
      %513 = vmatprep.mubr.f32.mxu0 0.0
      %514 = vmatmul.mubr.f32.gmra.mrb[0].mxu0 %v297
      %v515 = vpop.f32.mrb[0].mxu0
      %v516 = vadd.f32 0.0, %v515
      %v517 = vpop.f32.mrb[0].mxu0
      %v518 = vadd.f32 0.0, %v517
      %519 = vmatprep.mubr.f32.mxu0 0.0
      %520 = vmatmul.mubr.f32.gmra.mrb[0].mxu0 %v300
      %v521 = vpop.f32.mrb[0].mxu0
      %v522 = vadd.f32 0.0, %v521
      %v523 = vpop.f32.mrb[0].mxu0
      %v524 = vadd.f32 0.0, %v523
      %525 = vmatprep.mubr.f32.mxu0 0.0
      %526 = vmatmul.mubr.f32.gmra.mrb[0].mxu0 %v303
      %v527 = vpop.f32.mrb[0].mxu0
      %v528 = vadd.f32 0.0, %v527
      %v529 = vpop.f32.mrb[0].mxu0
      %v530 = vadd.f32 0.0, %v529
      %531 = vmatprep.mubr.f32.mxu0 0.0
      %532 = vmatmul.mubr.f32.gmra.mrb[0].mxu0 %v306
      %v533 = vpop.f32.mrb[0].mxu0
      %v534 = vadd.f32 0.0, %v533
      %v535 = vpop.f32.mrb[0].mxu0
      %v536 = vadd.f32 0.0, %v535
      %537 = vmatprep.mubr.f32.mxu0 0.0
      %538 = vmatmul.mubr.f32.gmra.mrb[0].mxu0 %v309
      %v539 = vpop.f32.mrb[0].mxu0
      %v540 = vadd.f32 0.0, %v539
      %v541 = vpop.f32.mrb[0].mxu0
      %v542 = vadd.f32 0.0, %v541
      %543 = vmatprep.mubr.f32.mxu0 0.0
      %544 = vmatmul.mubr.f32.gmra.mrb[0].mxu0 %v312
      %v545 = vpop.f32.mrb[0].mxu0
      %v546 = vadd.f32 0.0, %v545
      %v547 = vpop.f32.mrb[0].mxu0
      %v548 = vadd.f32 0.0, %v547
      %549 = vmatprep.mubr.f32.mxu0 0.0
      %550 = vmatmul.mubr.f32.gmra.mrb[0].mxu0 %v315
      %v551 = vpop.f32.mrb[0].mxu0
      %v552 = vadd.f32 0.0, %v551
      %v553 = vpop.f32.mrb[0].mxu0
      %v554 = vadd.f32 0.0, %v553
      %555 = vmatprep.mubr.f32.mxu0 0.0
      %556 = vmatmul.mubr.f32.gmra.mrb[0].mxu0 %v318
      %v557 = vpop.f32.mrb[0].mxu0
      %v558 = vadd.f32 0.0, %v557
      %v559 = vpop.f32.mrb[0].mxu0
      %v560 = vadd.f32 0.0, %v559
      %561 = vmatprep.mubr.f32.mxu0 0.0
      %562 = vmatmul.mubr.f32.gmra.mrb[0].mxu0 %v321
      %v563 = vpop.f32.mrb[0].mxu0
      %v564 = vadd.f32 0.0, %v563
      %v565 = vpop.f32.mrb[0].mxu0
      %v566 = vadd.f32 0.0, %v565
      %567 = vmatprep.mubr.f32.mxu0 0.0
      %568 = vmatmul.mubr.f32.gmra.mrb[0].mxu0 %v324
      %v569 = vpop.f32.mrb[0].mxu0
      %v570 = vadd.f32 0.0, %v569
      %v571 = vpop.f32.mrb[0].mxu0
      %v572 = vadd.f32 0.0, %v571
      %573 = vmatprep.mubr.f32.mxu0 0.0
      %574 = vmatmul.mubr.f32.gmra.mrb[0].mxu0 %v327
      %v575 = vpop.f32.mrb[0].mxu0
      %v576 = vadd.f32 0.0, %v575
      %v577 = vpop.f32.mrb[0].mxu0
      %v578 = vadd.f32 0.0, %v577
      %579 = vmatprep.mubr.f32.mxu0 0.0
      %580 = vmatmul.mubr.f32.gmra.mrb[0].mxu0 %v330
      %v581 = vpop.f32.mrb[0].mxu0
      %v582 = vadd.f32 0.0, %v581
      %v583 = vpop.f32.mrb[0].mxu0
      %v584 = vadd.f32 0.0, %v583
      %585 = vmatprep.mubr.f32.mxu0 0.0
      %586 = vmatmul.mubr.f32.gmra.mrb[0].mxu0 %v333
      %v587 = vpop.f32.mrb[0].mxu0
      %v588 = vadd.f32 0.0, %v587
      %v589 = vpop.f32.mrb[0].mxu0
      %v590 = vadd.f32 0.0, %v589
      %591 = vdwg.mxu0
      %v592 = vmax.f32 %v402, %v404
      %593 = vmax.xlane.f32.xlu0 %v592
      %v594 = vpop.xlane.xlu0 %593
      %v595 = vmax.f32 %v408, %v410
      %596 = vmax.xlane.f32.xlu0 %v595
      %v597 = vpop.xlane.xlu0 %596
      %v598 = vmax.f32 %v414, %v416
      %599 = vmax.xlane.f32.xlu0 %v598
      %v600 = vpop.xlane.xlu0 %599
      %v601 = vmax.f32 %v420, %v422
      %602 = vmax.xlane.f32.xlu0 %v601
      %v603 = vpop.xlane.xlu0 %602
      %v604 = vmax.f32 %v426, %v428
      %605 = vmax.xlane.f32.xlu0 %v604
      %v606 = vpop.xlane.xlu0 %605
      %v607 = vmax.f32 %v432, %v434
      %608 = vmax.xlane.f32.xlu0 %v607
      %v609 = vpop.xlane.xlu0 %608
      %v610 = vmax.f32 %v438, %v440
      %611 = vmax.xlane.f32.xlu0 %v610
      %v612 = vpop.xlane.xlu0 %611
      %v613 = vmax.f32 %v444, %v446
      %614 = vmax.xlane.f32.xlu0 %v613
      %v615 = vpop.xlane.xlu0 %614
      %v616 = vmax.f32 %v450, %v452
      %617 = vmax.xlane.f32.xlu0 %v616
      %v618 = vpop.xlane.xlu0 %617
      %v619 = vmax.f32 %v456, %v458
      %620 = vmax.xlane.f32.xlu0 %v619
      %v621 = vpop.xlane.xlu0 %620
      %v622 = vmax.f32 %v462, %v464
      %623 = vmax.xlane.f32.xlu0 %v622
      %v624 = vpop.xlane.xlu0 %623
      %v625 = vmax.f32 %v468, %v470
      %626 = vmax.xlane.f32.xlu0 %v625
      %v627 = vpop.xlane.xlu0 %626
      %v628 = vmax.f32 %v474, %v476
      %629 = vmax.xlane.f32.xlu0 %v628
      %v630 = vpop.xlane.xlu0 %629
      %v631 = vmax.f32 %v480, %v482
      %632 = vmax.xlane.f32.xlu0 %v631
      %v633 = vpop.xlane.xlu0 %632
      %v634 = vmax.f32 %v486, %v488
      %635 = vmax.xlane.f32.xlu0 %v634
      %v636 = vpop.xlane.xlu0 %635
      %v637 = vmax.f32 %v492, %v494
      %638 = vmax.xlane.f32.xlu0 %v637
      %v639 = vpop.xlane.xlu0 %638
      %v640 = vmax.f32 %v498, %v500
      %641 = vmax.xlane.f32.xlu0 %v640
      %v642 = vpop.xlane.xlu0 %641
      %v643 = vmax.f32 %v504, %v506
      %644 = vmax.xlane.f32.xlu0 %v643
      %v645 = vpop.xlane.xlu0 %644
      %v646 = vmax.f32 %v510, %v512
      %647 = vmax.xlane.f32.xlu0 %v646
      %v648 = vpop.xlane.xlu0 %647
      %v649 = vmax.f32 %v516, %v518
      %650 = vmax.xlane.f32.xlu0 %v649
      %v651 = vpop.xlane.xlu0 %650
      %v652 = vmax.f32 %v522, %v524
      %653 = vmax.xlane.f32.xlu0 %v652
      %v654 = vpop.xlane.xlu0 %653
      %v655 = vmax.f32 %v528, %v530
      %656 = vmax.xlane.f32.xlu0 %v655
      %v657 = vpop.xlane.xlu0 %656
      %v658 = vmax.f32 %v534, %v536
      %659 = vmax.xlane.f32.xlu0 %v658
      %v660 = vpop.xlane.xlu0 %659
      %v661 = vmax.f32 %v540, %v542
      %662 = vmax.xlane.f32.xlu0 %v661
      %v663 = vpop.xlane.xlu0 %662
      %v664 = vmax.f32 %v546, %v548
      %665 = vmax.xlane.f32.xlu0 %v664
      %v666 = vpop.xlane.xlu0 %665
      %v667 = vmax.f32 %v552, %v554
      %668 = vmax.xlane.f32.xlu0 %v667
      %v669 = vpop.xlane.xlu0 %668
      %v670 = vmax.f32 %v558, %v560
      %671 = vmax.xlane.f32.xlu0 %v670
      %v672 = vpop.xlane.xlu0 %671
      %v673 = vmax.f32 %v564, %v566
      %674 = vmax.xlane.f32.xlu0 %v673
      %v675 = vpop.xlane.xlu0 %674
      %v676 = vmax.f32 %v570, %v572
      %677 = vmax.xlane.f32.xlu0 %v676
      %v678 = vpop.xlane.xlu0 %677
      %v679 = vmax.f32 %v576, %v578
      %680 = vmax.xlane.f32.xlu0 %v679
      %v681 = vpop.xlane.xlu0 %680
      %v682 = vmax.f32 %v582, %v584
      %683 = vmax.xlane.f32.xlu0 %v682
      %v684 = vpop.xlane.xlu0 %683
      %v685 = vmax.f32 %v588, %v590
      %686 = vmax.xlane.f32.xlu0 %v685
      %v687 = vpop.xlane.xlu0 %686
      %v688 = vsub.f32 %v402, %v594
      %v689 = vsub.f32 %v404, %v594
      %v690 = vsub.f32 %v408, %v597
      %v691 = vsub.f32 %v410, %v597
      %v692 = vsub.f32 %v414, %v600
      %v693 = vsub.f32 %v416, %v600
      %v694 = vsub.f32 %v420, %v603
      %v695 = vsub.f32 %v422, %v603
      %v696 = vsub.f32 %v426, %v606
      %v697 = vsub.f32 %v428, %v606
      %v698 = vsub.f32 %v432, %v609
      %v699 = vsub.f32 %v434, %v609
      %v700 = vsub.f32 %v438, %v612
      %v701 = vsub.f32 %v440, %v612
      %v702 = vsub.f32 %v444, %v615
      %v703 = vsub.f32 %v446, %v615
      %v704 = vsub.f32 %v450, %v618
      %v705 = vsub.f32 %v452, %v618
      %v706 = vsub.f32 %v456, %v621
      %v707 = vsub.f32 %v458, %v621
      %v708 = vsub.f32 %v462, %v624
      %v709 = vsub.f32 %v464, %v624
      %v710 = vsub.f32 %v468, %v627
      %v711 = vsub.f32 %v470, %v627
      %v712 = vsub.f32 %v474, %v630
      %v713 = vsub.f32 %v476, %v630
      %v714 = vsub.f32 %v480, %v633
      %v715 = vsub.f32 %v482, %v633
      %v716 = vsub.f32 %v486, %v636
      %v717 = vsub.f32 %v488, %v636
      %v718 = vsub.f32 %v492, %v639
      %v719 = vsub.f32 %v494, %v639
      %v720 = vsub.f32 %v498, %v642
      %v721 = vsub.f32 %v500, %v642
      %v722 = vsub.f32 %v504, %v645
      %v723 = vsub.f32 %v506, %v645
      %v724 = vsub.f32 %v510, %v648
      %v725 = vsub.f32 %v512, %v648
      %v726 = vsub.f32 %v516, %v651
      %v727 = vsub.f32 %v518, %v651
      %v728 = vsub.f32 %v522, %v654
      %v729 = vsub.f32 %v524, %v654
      %v730 = vsub.f32 %v528, %v657
      %v731 = vsub.f32 %v530, %v657
      %v732 = vsub.f32 %v534, %v660
      %v733 = vsub.f32 %v536, %v660
      %v734 = vsub.f32 %v540, %v663
      %v735 = vsub.f32 %v542, %v663
      %v736 = vsub.f32 %v546, %v666
      %v737 = vsub.f32 %v548, %v666
      %v738 = vsub.f32 %v552, %v669
      %v739 = vsub.f32 %v554, %v669
      %v740 = vsub.f32 %v558, %v672
      %v741 = vsub.f32 %v560, %v672
      %v742 = vsub.f32 %v564, %v675
      %v743 = vsub.f32 %v566, %v675
      %v744 = vsub.f32 %v570, %v678
      %v745 = vsub.f32 %v572, %v678
      %v746 = vsub.f32 %v576, %v681
      %v747 = vsub.f32 %v578, %v681
      %v748 = vsub.f32 %v582, %v684
      %v749 = vsub.f32 %v584, %v684
      %v750 = vsub.f32 %v588, %v687
      %v751 = vsub.f32 %v590, %v687
      %v752 = vmul.f32 %v688, 1.442695
      %v753 = vpow.pop %v752
      %v754 = vmul.f32 %v689, 1.442695
      %v755 = vpow.pop %v754
      %v756 = vmul.f32 %v690, 1.442695
      %v757 = vpow.pop %v756
      %v758 = vmul.f32 %v691, 1.442695
      %v759 = vpow.pop %v758
      %v760 = vmul.f32 %v692, 1.442695
      %v761 = vpow.pop %v760
      %v762 = vmul.f32 %v693, 1.442695
      %v763 = vpow.pop %v762
      %v764 = vmul.f32 %v694, 1.442695
      %v765 = vpow.pop %v764
      %v766 = vmul.f32 %v695, 1.442695
      %v767 = vpow.pop %v766
      %v768 = vmul.f32 %v696, 1.442695
      %v769 = vpow.pop %v768
      %v770 = vmul.f32 %v697, 1.442695
      %v771 = vpow.pop %v770
      %v772 = vmul.f32 %v698, 1.442695
      %v773 = vpow.pop %v772
      %v774 = vmul.f32 %v699, 1.442695
      %v775 = vpow.pop %v774
      %v776 = vmul.f32 %v700, 1.442695
      %v777 = vpow.pop %v776
      %v778 = vmul.f32 %v701, 1.442695
      %v779 = vpow.pop %v778
      %v780 = vmul.f32 %v702, 1.442695
      %v781 = vpow.pop %v780
      %v782 = vmul.f32 %v703, 1.442695
      %v783 = vpow.pop %v782
      %v784 = vmul.f32 %v704, 1.442695
      %v785 = vpow.pop %v784
      %v786 = vmul.f32 %v705, 1.442695
      %v787 = vpow.pop %v786
      %v788 = vmul.f32 %v706, 1.442695
      %v789 = vpow.pop %v788
      %v790 = vmul.f32 %v707, 1.442695
      %v791 = vpow.pop %v790
      %v792 = vmul.f32 %v708, 1.442695
      %v793 = vpow.pop %v792
      %v794 = vmul.f32 %v709, 1.442695
      %v795 = vpow.pop %v794
      %v796 = vmul.f32 %v710, 1.442695
      %v797 = vpow.pop %v796
      %v798 = vmul.f32 %v711, 1.442695
      %v799 = vpow.pop %v798
      %v800 = vmul.f32 %v712, 1.442695
      %v801 = vpow.pop %v800
      %v802 = vmul.f32 %v713, 1.442695
      %v803 = vpow.pop %v802
      %v804 = vmul.f32 %v714, 1.442695
      %v805 = vpow.pop %v804
      %v806 = vmul.f32 %v715, 1.442695
      %v807 = vpow.pop %v806
      %v808 = vmul.f32 %v716, 1.442695
      %v809 = vpow.pop %v808
      %v810 = vmul.f32 %v717, 1.442695
      %v811 = vpow.pop %v810
      %v812 = vmul.f32 %v718, 1.442695
      %v813 = vpow.pop %v812
      %v814 = vmul.f32 %v719, 1.442695
      %v815 = vpow.pop %v814
      %v816 = vmul.f32 %v720, 1.442695
      %v817 = vpow.pop %v816
      %v818 = vmul.f32 %v721, 1.442695
      %v819 = vpow.pop %v818
      %v820 = vmul.f32 %v722, 1.442695
      %v821 = vpow.pop %v820
      %v822 = vmul.f32 %v723, 1.442695
      %v823 = vpow.pop %v822
      %v824 = vmul.f32 %v724, 1.442695
      %v825 = vpow.pop %v824
      %v826 = vmul.f32 %v725, 1.442695
      %v827 = vpow.pop %v826
      %v828 = vmul.f32 %v726, 1.442695
      %v829 = vpow.pop %v828
      %v830 = vmul.f32 %v727, 1.442695
      %v831 = vpow.pop %v830
      %v832 = vmul.f32 %v728, 1.442695
      %v833 = vpow.pop %v832
      %v834 = vmul.f32 %v729, 1.442695
      %v835 = vpow.pop %v834
      %v836 = vmul.f32 %v730, 1.442695
      %v837 = vpow.pop %v836
      %v838 = vmul.f32 %v731, 1.442695
      %v839 = vpow.pop %v838
      %v840 = vmul.f32 %v732, 1.442695
      %v841 = vpow.pop %v840
      %v842 = vmul.f32 %v733, 1.442695
      %v843 = vpow.pop %v842
      %v844 = vmul.f32 %v734, 1.442695
      %v845 = vpow.pop %v844
      %v846 = vmul.f32 %v735, 1.442695
      %v847 = vpow.pop %v846
      %v848 = vmul.f32 %v736, 1.442695
      %v849 = vpow.pop %v848
      %v850 = vmul.f32 %v737, 1.442695
      %v851 = vpow.pop %v850
      %v852 = vmul.f32 %v738, 1.442695
      %v853 = vpow.pop %v852
      %v854 = vmul.f32 %v739, 1.442695
      %v855 = vpow.pop %v854
      %v856 = vmul.f32 %v740, 1.442695
      %v857 = vpow.pop %v856
      %v858 = vmul.f32 %v741, 1.442695
      %v859 = vpow.pop %v858
      %v860 = vmul.f32 %v742, 1.442695
      %v861 = vpow.pop %v860
      %v862 = vmul.f32 %v743, 1.442695
      %v863 = vpow.pop %v862
      %v864 = vmul.f32 %v744, 1.442695
      %v865 = vpow.pop %v864
      %v866 = vmul.f32 %v745, 1.442695
      %v867 = vpow.pop %v866
      %v868 = vmul.f32 %v746, 1.442695
      %v869 = vpow.pop %v868
      %v870 = vmul.f32 %v747, 1.442695
      %v871 = vpow.pop %v870
      %v872 = vmul.f32 %v748, 1.442695
      %v873 = vpow.pop %v872
      %v874 = vmul.f32 %v749, 1.442695
      %v875 = vpow.pop %v874
      %v876 = vmul.f32 %v750, 1.442695
      %v877 = vpow.pop %v876
      %v878 = vmul.f32 %v751, 1.442695
      %v879 = vpow.pop %v878
      %880 = vmatprep.subr.mxu0 0.0
      %881 = vmatpush1.msra.mxu0 1.0
      %882 = vmatprep.subr.mxu0 0.0
      %883 = vmatpush1.msra.mxu0 1.0
      %884 = vmatprep.subr.mxu0 0.0
      %885 = vmatpush1.msra.mxu0 1.0
      %886 = vmatprep.subr.mxu0 0.0
      %887 = vmatpush1.msra.mxu0 1.0
      %888 = vmatprep.subr.mxu0 0.0
      %889 = vmatpush1.msra.mxu0 1.0
      %890 = vmatprep.subr.mxu0 0.0
      %891 = vmatpush1.msra.mxu0 1.0
      %892 = vmatprep.subr.mxu0 0.0
      %893 = vmatpush1.msra.mxu0 1.0
      %894 = vmatprep.subr.mxu0 0.0
      %895 = vmatpush1.msra.mxu0 1.0
      %896 = vmatprep.subr.mxu0 0.0
      %897 = vmatpush1.msra.mxu0 1.0
      %898 = vmatprep.subr.mxu0 0.0
      %899 = vmatpush1.msra.mxu0 1.0
      %900 = vmatprep.subr.mxu0 0.0
      %901 = vmatpush1.msra.mxu0 1.0
      %902 = vmatprep.subr.mxu0 0.0
      %903 = vmatpush1.msra.mxu0 1.0
      %904 = vmatprep.subr.mxu0 0.0
      %905 = vmatpush1.msra.mxu0 1.0
      %906 = vmatprep.subr.mxu0 0.0
      %907 = vmatpush1.msra.mxu0 1.0
      %908 = vmatprep.subr.mxu0 0.0
      %909 = vmatpush1.msra.mxu0 1.0
      %910 = vmatprep.subr.mxu0 0.0
      %911 = vmatpush1.msra.mxu0 1.0
      %912 = vmatprep.subr.mxu0 0.0
      %913 = vmatpush1.msra.mxu0 1.0
      %914 = vmatprep.subr.mxu0 0.0
      %915 = vmatpush1.msra.mxu0 1.0
      %916 = vmatprep.subr.mxu0 0.0
      %917 = vmatpush1.msra.mxu0 1.0
      %918 = vmatprep.subr.mxu0 0.0
      %919 = vmatpush1.msra.mxu0 1.0
      %920 = vmatprep.subr.mxu0 0.0
      %921 = vmatpush1.msra.mxu0 1.0
      %922 = vmatprep.subr.mxu0 0.0
      %923 = vmatpush1.msra.mxu0 1.0
      %924 = vmatprep.subr.mxu0 0.0
      %925 = vmatpush1.msra.mxu0 1.0
      %926 = vmatprep.subr.mxu0 0.0
      %927 = vmatpush1.msra.mxu0 1.0
      %928 = vmatprep.subr.mxu0 0.0
      %929 = vmatpush1.msra.mxu0 1.0
      %930 = vmatprep.subr.mxu0 0.0
      %931 = vmatpush1.msra.mxu0 1.0
      %932 = vmatprep.subr.mxu0 0.0
      %933 = vmatpush1.msra.mxu0 1.0
      %934 = vmatprep.subr.mxu0 0.0
      %935 = vmatpush1.msra.mxu0 1.0
      %936 = vmatprep.subr.mxu0 0.0
      %937 = vmatpush1.msra.mxu0 1.0
      %938 = vmatprep.subr.mxu0 0.0
      %939 = vmatpush1.msra.mxu0 1.0
      %940 = vmatprep.subr.mxu0 0.0
      %941 = vmatpush1.msra.mxu0 1.0
      %942 = vmatprep.subr.mxu0 0.0
      %943 = vmatpush1.msra.mxu0 1.0
      %944 = vmatprep.mubr.f32.mxu0 %v755
      %945 = vmatmul.mubr.f32.gmra.mrb[0].mxu0 %v753
      %v946 = vpop.f32.mrb[0].mxu0
      %v947 = vadd.f32 0.0, %v946
      %v948 = vpop.f32.mrb[0].mxu0
      %949 = vmatprep.mubr.f32.mxu0 %v759
      %950 = vmatmul.mubr.f32.gmra.mrb[0].mxu0 %v757
      %v951 = vpop.f32.mrb[0].mxu0
      %v952 = vadd.f32 0.0, %v951
      %v953 = vpop.f32.mrb[0].mxu0
      %954 = vmatprep.mubr.f32.mxu0 %v763
      %955 = vmatmul.mubr.f32.gmra.mrb[0].mxu0 %v761
      %v956 = vpop.f32.mrb[0].mxu0
      %v957 = vadd.f32 0.0, %v956
      %v958 = vpop.f32.mrb[0].mxu0
      %959 = vmatprep.mubr.f32.mxu0 %v767
      %960 = vmatmul.mubr.f32.gmra.mrb[0].mxu0 %v765
      %v961 = vpop.f32.mrb[0].mxu0
      %v962 = vadd.f32 0.0, %v961
      %v963 = vpop.f32.mrb[0].mxu0
      %964 = vmatprep.mubr.f32.mxu0 %v771
      %965 = vmatmul.mubr.f32.gmra.mrb[0].mxu0 %v769
      %v966 = vpop.f32.mrb[0].mxu0
      %v967 = vadd.f32 0.0, %v966
      %v968 = vpop.f32.mrb[0].mxu0
      %969 = vmatprep.mubr.f32.mxu0 %v775
      %970 = vmatmul.mubr.f32.gmra.mrb[0].mxu0 %v773
      %v971 = vpop.f32.mrb[0].mxu0
      %v972 = vadd.f32 0.0, %v971
      %v973 = vpop.f32.mrb[0].mxu0
      %974 = vmatprep.mubr.f32.mxu0 %v779
      %975 = vmatmul.mubr.f32.gmra.mrb[0].mxu0 %v777
      %v976 = vpop.f32.mrb[0].mxu0
      %v977 = vadd.f32 0.0, %v976
      %v978 = vpop.f32.mrb[0].mxu0
      %979 = vmatprep.mubr.f32.mxu0 %v783
      %980 = vmatmul.mubr.f32.gmra.mrb[0].mxu0 %v781
      %v981 = vpop.f32.mrb[0].mxu0
      %v982 = vadd.f32 0.0, %v981
      %v983 = vpop.f32.mrb[0].mxu0
      %984 = vmatprep.mubr.f32.mxu0 %v787
      %985 = vmatmul.mubr.f32.gmra.mrb[0].mxu0 %v785
      %v986 = vpop.f32.mrb[0].mxu0
      %v987 = vadd.f32 0.0, %v986
      %v988 = vpop.f32.mrb[0].mxu0
      %989 = vmatprep.mubr.f32.mxu0 %v791
      %990 = vmatmul.mubr.f32.gmra.mrb[0].mxu0 %v789
      %v991 = vpop.f32.mrb[0].mxu0
      %v992 = vadd.f32 0.0, %v991
      %v993 = vpop.f32.mrb[0].mxu0
      %994 = vmatprep.mubr.f32.mxu0 %v795
      %995 = vmatmul.mubr.f32.gmra.mrb[0].mxu0 %v793
      %v996 = vpop.f32.mrb[0].mxu0
      %v997 = vadd.f32 0.0, %v996
      %v998 = vpop.f32.mrb[0].mxu0
      %999 = vmatprep.mubr.f32.mxu0 %v799
      %1000 = vmatmul.mubr.f32.gmra.mrb[0].mxu0 %v797
      %v1001 = vpop.f32.mrb[0].mxu0
      %v1002 = vadd.f32 0.0, %v1001
      %v1003 = vpop.f32.mrb[0].mxu0
      %1004 = vmatprep.mubr.f32.mxu0 %v803
      %1005 = vmatmul.mubr.f32.gmra.mrb[0].mxu0 %v801
      %v1006 = vpop.f32.mrb[0].mxu0
      %v1007 = vadd.f32 0.0, %v1006
      %v1008 = vpop.f32.mrb[0].mxu0
      %1009 = vmatprep.mubr.f32.mxu0 %v807
      %1010 = vmatmul.mubr.f32.gmra.mrb[0].mxu0 %v805
      %v1011 = vpop.f32.mrb[0].mxu0
      %v1012 = vadd.f32 0.0, %v1011
      %v1013 = vpop.f32.mrb[0].mxu0
      %1014 = vmatprep.mubr.f32.mxu0 %v811
      %1015 = vmatmul.mubr.f32.gmra.mrb[0].mxu0 %v809
      %v1016 = vpop.f32.mrb[0].mxu0
      %v1017 = vadd.f32 0.0, %v1016
      %v1018 = vpop.f32.mrb[0].mxu0
      %1019 = vmatprep.mubr.f32.mxu0 %v815
      %1020 = vmatmul.mubr.f32.gmra.mrb[0].mxu0 %v813
      %v1021 = vpop.f32.mrb[0].mxu0
      %v1022 = vadd.f32 0.0, %v1021
      %v1023 = vpop.f32.mrb[0].mxu0
      %1024 = vmatprep.mubr.f32.mxu0 %v819
      %1025 = vmatmul.mubr.f32.gmra.mrb[0].mxu0 %v817
      %v1026 = vpop.f32.mrb[0].mxu0
      %v1027 = vadd.f32 0.0, %v1026
      %v1028 = vpop.f32.mrb[0].mxu0
      %1029 = vmatprep.mubr.f32.mxu0 %v823
      %1030 = vmatmul.mubr.f32.gmra.mrb[0].mxu0 %v821
      %v1031 = vpop.f32.mrb[0].mxu0
      %v1032 = vadd.f32 0.0, %v1031
      %v1033 = vpop.f32.mrb[0].mxu0
      %1034 = vmatprep.mubr.f32.mxu0 %v827
      %1035 = vmatmul.mubr.f32.gmra.mrb[0].mxu0 %v825
      %v1036 = vpop.f32.mrb[0].mxu0
      %v1037 = vadd.f32 0.0, %v1036
      %v1038 = vpop.f32.mrb[0].mxu0
      %1039 = vmatprep.mubr.f32.mxu0 %v831
      %1040 = vmatmul.mubr.f32.gmra.mrb[0].mxu0 %v829
      %v1041 = vpop.f32.mrb[0].mxu0
      %v1042 = vadd.f32 0.0, %v1041
      %v1043 = vpop.f32.mrb[0].mxu0
      %1044 = vmatprep.mubr.f32.mxu0 %v835
      %1045 = vmatmul.mubr.f32.gmra.mrb[0].mxu0 %v833
      %v1046 = vpop.f32.mrb[0].mxu0
      %v1047 = vadd.f32 0.0, %v1046
      %v1048 = vpop.f32.mrb[0].mxu0
      %1049 = vmatprep.mubr.f32.mxu0 %v839
      %1050 = vmatmul.mubr.f32.gmra.mrb[0].mxu0 %v837
      %v1051 = vpop.f32.mrb[0].mxu0
      %v1052 = vadd.f32 0.0, %v1051
      %v1053 = vpop.f32.mrb[0].mxu0
      %1054 = vmatprep.mubr.f32.mxu0 %v843
      %1055 = vmatmul.mubr.f32.gmra.mrb[0].mxu0 %v841
      %v1056 = vpop.f32.mrb[0].mxu0
      %v1057 = vadd.f32 0.0, %v1056
      %v1058 = vpop.f32.mrb[0].mxu0
      %1059 = vmatprep.mubr.f32.mxu0 %v847
      %1060 = vmatmul.mubr.f32.gmra.mrb[0].mxu0 %v845
      %v1061 = vpop.f32.mrb[0].mxu0
      %v1062 = vadd.f32 0.0, %v1061
      %v1063 = vpop.f32.mrb[0].mxu0
      %1064 = vmatprep.mubr.f32.mxu0 %v851
      %1065 = vmatmul.mubr.f32.gmra.mrb[0].mxu0 %v849
      %v1066 = vpop.f32.mrb[0].mxu0
      %v1067 = vadd.f32 0.0, %v1066
      %v1068 = vpop.f32.mrb[0].mxu0
      %1069 = vmatprep.mubr.f32.mxu0 %v855
      %1070 = vmatmul.mubr.f32.gmra.mrb[0].mxu0 %v853
      %v1071 = vpop.f32.mrb[0].mxu0
      %v1072 = vadd.f32 0.0, %v1071
      %v1073 = vpop.f32.mrb[0].mxu0
      %1074 = vmatprep.mubr.f32.mxu0 %v859
      %1075 = vmatmul.mubr.f32.gmra.mrb[0].mxu0 %v857
      %v1076 = vpop.f32.mrb[0].mxu0
      %v1077 = vadd.f32 0.0, %v1076
      %v1078 = vpop.f32.mrb[0].mxu0
      %1079 = vmatprep.mubr.f32.mxu0 %v863
      %1080 = vmatmul.mubr.f32.gmra.mrb[0].mxu0 %v861
      %v1081 = vpop.f32.mrb[0].mxu0
      %v1082 = vadd.f32 0.0, %v1081
      %v1083 = vpop.f32.mrb[0].mxu0
      %1084 = vmatprep.mubr.f32.mxu0 %v867
      %1085 = vmatmul.mubr.f32.gmra.mrb[0].mxu0 %v865
      %v1086 = vpop.f32.mrb[0].mxu0
      %v1087 = vadd.f32 0.0, %v1086
      %v1088 = vpop.f32.mrb[0].mxu0
      %1089 = vmatprep.mubr.f32.mxu0 %v871
      %1090 = vmatmul.mubr.f32.gmra.mrb[0].mxu0 %v869
      %v1091 = vpop.f32.mrb[0].mxu0
      %v1092 = vadd.f32 0.0, %v1091
      %v1093 = vpop.f32.mrb[0].mxu0
      %1094 = vmatprep.mubr.f32.mxu0 %v875
      %1095 = vmatmul.mubr.f32.gmra.mrb[0].mxu0 %v873
      %v1096 = vpop.f32.mrb[0].mxu0
      %v1097 = vadd.f32 0.0, %v1096
      %v1098 = vpop.f32.mrb[0].mxu0
      %1099 = vmatprep.mubr.f32.mxu0 %v879
      %1100 = vmatmul.mubr.f32.gmra.mrb[0].mxu0 %v877
      %v1101 = vpop.f32.mrb[0].mxu0
      %v1102 = vadd.f32 0.0, %v1101
      %v1103 = vpop.f32.mrb[0].mxu0
      %1104 = vdwg.mxu0
      %v1105 = vrcp.pop %v947
      %v1106 = vrcp.pop %v952
      %v1107 = vrcp.pop %v957
      %v1108 = vrcp.pop %v962
      %v1109 = vrcp.pop %v967
      %v1110 = vrcp.pop %v972
      %v1111 = vrcp.pop %v977
      %v1112 = vrcp.pop %v982
      %v1113 = vrcp.pop %v987
      %v1114 = vrcp.pop %v992
      %v1115 = vrcp.pop %v997
      %v1116 = vrcp.pop %v1002
      %v1117 = vrcp.pop %v1007
      %v1118 = vrcp.pop %v1012
      %v1119 = vrcp.pop %v1017
      %v1120 = vrcp.pop %v1022
      %v1121 = vrcp.pop %v1027
      %v1122 = vrcp.pop %v1032
      %v1123 = vrcp.pop %v1037
      %v1124 = vrcp.pop %v1042
      %v1125 = vrcp.pop %v1047
      %v1126 = vrcp.pop %v1052
      %v1127 = vrcp.pop %v1057
      %v1128 = vrcp.pop %v1062
      %v1129 = vrcp.pop %v1067
      %v1130 = vrcp.pop %v1072
      %v1131 = vrcp.pop %v1077
      %v1132 = vrcp.pop %v1082
      %v1133 = vrcp.pop %v1087
      %v1134 = vrcp.pop %v1092
      %v1135 = vrcp.pop %v1097
      %v1136 = vrcp.pop %v1102
      %v1137 = vmul.f32 %v947, %v1105
      %v1138 = vmul.f32 %v952, %v1106
      %v1139 = vmul.f32 %v957, %v1107
      %v1140 = vmul.f32 %v962, %v1108
      %v1141 = vmul.f32 %v967, %v1109
      %v1142 = vmul.f32 %v972, %v1110
      %v1143 = vmul.f32 %v977, %v1111
      %v1144 = vmul.f32 %v982, %v1112
      %v1145 = vmul.f32 %v987, %v1113
      %v1146 = vmul.f32 %v992, %v1114
      %v1147 = vmul.f32 %v997, %v1115
      %v1148 = vmul.f32 %v1002, %v1116
      %v1149 = vmul.f32 %v1007, %v1117
      %v1150 = vmul.f32 %v1012, %v1118
      %v1151 = vmul.f32 %v1017, %v1119
      %v1152 = vmul.f32 %v1022, %v1120
      %v1153 = vmul.f32 %v1027, %v1121
      %v1154 = vmul.f32 %v1032, %v1122
      %v1155 = vmul.f32 %v1037, %v1123
      %v1156 = vmul.f32 %v1042, %v1124
      %v1157 = vmul.f32 %v1047, %v1125
      %v1158 = vmul.f32 %v1052, %v1126
      %v1159 = vmul.f32 %v1057, %v1127
      %v1160 = vmul.f32 %v1062, %v1128
      %v1161 = vmul.f32 %v1067, %v1129
      %v1162 = vmul.f32 %v1072, %v1130
      %v1163 = vmul.f32 %v1077, %v1131
      %v1164 = vmul.f32 %v1082, %v1132
      %v1165 = vmul.f32 %v1087, %v1133
      %v1166 = vmul.f32 %v1092, %v1134
      %v1167 = vmul.f32 %v1097, %v1135
      %v1168 = vmul.f32 %v1102, %v1136
      %v1169 = vsub.f32 2.0, %v1137
      %v1170 = vsub.f32 2.0, %v1138
      %v1171 = vsub.f32 2.0, %v1139
      %v1172 = vsub.f32 2.0, %v1140
      %v1173 = vsub.f32 2.0, %v1141
      %v1174 = vsub.f32 2.0, %v1142
      %v1175 = vsub.f32 2.0, %v1143
      %v1176 = vsub.f32 2.0, %v1144
      %v1177 = vsub.f32 2.0, %v1145
      %v1178 = vsub.f32 2.0, %v1146
      %v1179 = vsub.f32 2.0, %v1147
      %v1180 = vsub.f32 2.0, %v1148
      %v1181 = vsub.f32 2.0, %v1149
      %v1182 = vsub.f32 2.0, %v1150
      %v1183 = vsub.f32 2.0, %v1151
      %v1184 = vsub.f32 2.0, %v1152
      %v1185 = vsub.f32 2.0, %v1153
      %v1186 = vsub.f32 2.0, %v1154
      %v1187 = vsub.f32 2.0, %v1155
      %v1188 = vsub.f32 2.0, %v1156
      %v1189 = vsub.f32 2.0, %v1157
      %v1190 = vsub.f32 2.0, %v1158
      %v1191 = vsub.f32 2.0, %v1159
      %v1192 = vsub.f32 2.0, %v1160
      %v1193 = vsub.f32 2.0, %v1161
      %v1194 = vsub.f32 2.0, %v1162
      %v1195 = vsub.f32 2.0, %v1163
      %v1196 = vsub.f32 2.0, %v1164
      %v1197 = vsub.f32 2.0, %v1165
      %v1198 = vsub.f32 2.0, %v1166
      %v1199 = vsub.f32 2.0, %v1167
      %v1200 = vsub.f32 2.0, %v1168
      %v1201 = vmul.f32 %v1105, %v1169
      %v1202 = vmul.f32 %v1106, %v1170
      %v1203 = vmul.f32 %v1107, %v1171
      %v1204 = vmul.f32 %v1108, %v1172
      %v1205 = vmul.f32 %v1109, %v1173
      %v1206 = vmul.f32 %v1110, %v1174
      %v1207 = vmul.f32 %v1111, %v1175
      %v1208 = vmul.f32 %v1112, %v1176
      %v1209 = vmul.f32 %v1113, %v1177
      %v1210 = vmul.f32 %v1114, %v1178
      %v1211 = vmul.f32 %v1115, %v1179
      %v1212 = vmul.f32 %v1116, %v1180
      %v1213 = vmul.f32 %v1117, %v1181
      %v1214 = vmul.f32 %v1118, %v1182
      %v1215 = vmul.f32 %v1119, %v1183
      %v1216 = vmul.f32 %v1120, %v1184
      %v1217 = vmul.f32 %v1121, %v1185
      %v1218 = vmul.f32 %v1122, %v1186
      %v1219 = vmul.f32 %v1123, %v1187
      %v1220 = vmul.f32 %v1124, %v1188
      %v1221 = vmul.f32 %v1125, %v1189
      %v1222 = vmul.f32 %v1126, %v1190
      %v1223 = vmul.f32 %v1127, %v1191
      %v1224 = vmul.f32 %v1128, %v1192
      %v1225 = vmul.f32 %v1129, %v1193
      %v1226 = vmul.f32 %v1130, %v1194
      %v1227 = vmul.f32 %v1131, %v1195
      %v1228 = vmul.f32 %v1132, %v1196
      %v1229 = vmul.f32 %v1133, %v1197
      %v1230 = vmul.f32 %v1134, %v1198
      %v1231 = vmul.f32 %v1135, %v1199
      %v1232 = vmul.f32 %v1136, %v1200
      %s1233 = sld [smem:[#allocation2]]
      %v1234 = vstv %s1233
      %v1235 = vmul.f32 %v1234, %v1201
      %v1236 = vmul.f32 %v1234, %v1202
      %v1237 = vmul.f32 %v1234, %v1203
      %v1238 = vmul.f32 %v1234, %v1204
      %v1239 = vmul.f32 %v1234, %v1205
      %v1240 = vmul.f32 %v1234, %v1206
      %v1241 = vmul.f32 %v1234, %v1207
      %v1242 = vmul.f32 %v1234, %v1208
      %v1243 = vmul.f32 %v1234, %v1209
      %v1244 = vmul.f32 %v1234, %v1210
      %v1245 = vmul.f32 %v1234, %v1211
      %v1246 = vmul.f32 %v1234, %v1212
      %v1247 = vmul.f32 %v1234, %v1213
      %v1248 = vmul.f32 %v1234, %v1214
      %v1249 = vmul.f32 %v1234, %v1215
      %v1250 = vmul.f32 %v1234, %v1216
      %v1251 = vmul.f32 %v1234, %v1217
      %v1252 = vmul.f32 %v1234, %v1218
      %v1253 = vmul.f32 %v1234, %v1219
      %v1254 = vmul.f32 %v1234, %v1220
      %v1255 = vmul.f32 %v1234, %v1221
      %v1256 = vmul.f32 %v1234, %v1222
      %v1257 = vmul.f32 %v1234, %v1223
      %v1258 = vmul.f32 %v1234, %v1224
      %v1259 = vmul.f32 %v1234, %v1225
      %v1260 = vmul.f32 %v1234, %v1226
      %v1261 = vmul.f32 %v1234, %v1227
      %v1262 = vmul.f32 %v1234, %v1228
      %v1263 = vmul.f32 %v1234, %v1229
      %v1264 = vmul.f32 %v1234, %v1230
      %v1265 = vmul.f32 %v1234, %v1231
      %v1266 = vmul.f32 %v1234, %v1232
      %1268 = vset.pattern.permute.xlu0 0
      %1269 = vperm.xlu0 %1268, %v1235
      %v1270 = vpop.permute.xlu0 %1269
      %1273 = vset.pattern.permute.xlu0 0
      %1274 = vperm.xlu0 %1273, %v1236
      %v1275 = vpop.permute.xlu0 %1274
      %1278 = vset.pattern.permute.xlu0 0
      %1279 = vperm.xlu0 %1278, %v1237
      %v1280 = vpop.permute.xlu0 %1279
      %1283 = vset.pattern.permute.xlu0 0
      %1284 = vperm.xlu0 %1283, %v1238
      %v1285 = vpop.permute.xlu0 %1284
      %1288 = vset.pattern.permute.xlu0 0
      %1289 = vperm.xlu0 %1288, %v1239
      %v1290 = vpop.permute.xlu0 %1289
      %1293 = vset.pattern.permute.xlu0 0
      %1294 = vperm.xlu0 %1293, %v1240
      %v1295 = vpop.permute.xlu0 %1294
      %1298 = vset.pattern.permute.xlu0 0
      %1299 = vperm.xlu0 %1298, %v1241
      %v1300 = vpop.permute.xlu0 %1299
      %1303 = vset.pattern.permute.xlu0 0
      %1304 = vperm.xlu0 %1303, %v1242
      %v1305 = vpop.permute.xlu0 %1304
      %1308 = vset.pattern.permute.xlu0 0
      %1309 = vperm.xlu0 %1308, %v1243
      %v1310 = vpop.permute.xlu0 %1309
      %1313 = vset.pattern.permute.xlu0 0
      %1314 = vperm.xlu0 %1313, %v1244
      %v1315 = vpop.permute.xlu0 %1314
      %1318 = vset.pattern.permute.xlu0 0
      %1319 = vperm.xlu0 %1318, %v1245
      %v1320 = vpop.permute.xlu0 %1319
      %1323 = vset.pattern.permute.xlu0 0
      %1324 = vperm.xlu0 %1323, %v1246
      %v1325 = vpop.permute.xlu0 %1324
      %1328 = vset.pattern.permute.xlu0 0
      %1329 = vperm.xlu0 %1328, %v1247
      %v1330 = vpop.permute.xlu0 %1329
      %1333 = vset.pattern.permute.xlu0 0
      %1334 = vperm.xlu0 %1333, %v1248
      %v1335 = vpop.permute.xlu0 %1334
      %1338 = vset.pattern.permute.xlu0 0
      %1339 = vperm.xlu0 %1338, %v1249
      %v1340 = vpop.permute.xlu0 %1339
      %1343 = vset.pattern.permute.xlu0 0
      %1344 = vperm.xlu0 %1343, %v1250
      %v1345 = vpop.permute.xlu0 %1344
      %1348 = vset.pattern.permute.xlu0 0
      %1349 = vperm.xlu0 %1348, %v1251
      %v1350 = vpop.permute.xlu0 %1349
      %1353 = vset.pattern.permute.xlu0 0
      %1354 = vperm.xlu0 %1353, %v1252
      %v1355 = vpop.permute.xlu0 %1354
      %1358 = vset.pattern.permute.xlu0 0
      %1359 = vperm.xlu0 %1358, %v1253
      %v1360 = vpop.permute.xlu0 %1359
      %1363 = vset.pattern.permute.xlu0 0
      %1364 = vperm.xlu0 %1363, %v1254
      %v1365 = vpop.permute.xlu0 %1364
      %1368 = vset.pattern.permute.xlu0 0
      %1369 = vperm.xlu0 %1368, %v1255
      %v1370 = vpop.permute.xlu0 %1369
      %1373 = vset.pattern.permute.xlu0 0
      %1374 = vperm.xlu0 %1373, %v1256
      %v1375 = vpop.permute.xlu0 %1374
      %1378 = vset.pattern.permute.xlu0 0
      %1379 = vperm.xlu0 %1378, %v1257
      %v1380 = vpop.permute.xlu0 %1379
      %1383 = vset.pattern.permute.xlu0 0
      %1384 = vperm.xlu0 %1383, %v1258
      %v1385 = vpop.permute.xlu0 %1384
      %1388 = vset.pattern.permute.xlu0 0
      %1389 = vperm.xlu0 %1388, %v1259
      %v1390 = vpop.permute.xlu0 %1389
      %1393 = vset.pattern.permute.xlu0 0
      %1394 = vperm.xlu0 %1393, %v1260
      %v1395 = vpop.permute.xlu0 %1394
      %1398 = vset.pattern.permute.xlu0 0
      %1399 = vperm.xlu0 %1398, %v1261
      %v1400 = vpop.permute.xlu0 %1399
      %1403 = vset.pattern.permute.xlu0 0
      %1404 = vperm.xlu0 %1403, %v1262
      %v1405 = vpop.permute.xlu0 %1404
      %1408 = vset.pattern.permute.xlu0 0
      %1409 = vperm.xlu0 %1408, %v1263
      %v1410 = vpop.permute.xlu0 %1409
      %1413 = vset.pattern.permute.xlu0 0
      %1414 = vperm.xlu0 %1413, %v1264
      %v1415 = vpop.permute.xlu0 %1414
      %1418 = vset.pattern.permute.xlu0 0
      %1419 = vperm.xlu0 %1418, %v1265
      %v1420 = vpop.permute.xlu0 %1419
      %1423 = vset.pattern.permute.xlu0 0
      %1424 = vperm.xlu0 %1423, %v1266
      %v1425 = vpop.permute.xlu0 %1424
      %1427 = vxpose.xlu0.b32.start [1/16] %v1270, 128
      %1428 = vxpose.xlu0.b32.cont [2/16] %v1275, 128
      %1429 = vxpose.xlu0.b32.cont [3/16] %v1280, 128
      %1430 = vxpose.xlu0.b32.cont [4/16] %v1285, 128
      %1431 = vxpose.xlu0.b32.cont [5/16] %v1290, 128
      %1432 = vxpose.xlu0.b32.cont [6/16] %v1295, 128
      %1433 = vxpose.xlu0.b32.cont [7/16] %v1300, 128
      %1434 = vxpose.xlu0.b32.cont [8/16] %v1305, 128
      %1435 = vxpose.xlu0.b32.cont [9/16] %v1310, 128
      %1436 = vxpose.xlu0.b32.cont [10/16] %v1315, 128
      %1437 = vxpose.xlu0.b32.cont [11/16] %v1320, 128
      %1438 = vxpose.xlu0.b32.cont [12/16] %v1325, 128
      %1439 = vxpose.xlu0.b32.cont [13/16] %v1330, 128
      %1440 = vxpose.xlu0.b32.cont [14/16] %v1335, 128
      %1441 = vxpose.xlu0.b32.cont [15/16] %v1340, 128
      %1442 = vxpose.xlu0.b32.end [16/16] %v1345, 128
      %v1443 = vpop.trf.xlu0
      %v1444 = vpop.trf.xlu0
      %v1445 = vpop.trf.xlu0
      %v1446 = vpop.trf.xlu0
      %v1447 = vpop.trf.xlu0
      %v1448 = vpop.trf.xlu0
      %v1449 = vpop.trf.xlu0
      %v1450 = vpop.trf.xlu0
      %v1451 = vpop.trf.xlu0
      %v1452 = vpop.trf.xlu0
      %v1453 = vpop.trf.xlu0
      %v1454 = vpop.trf.xlu0
      %v1455 = vpop.trf.xlu0
      %v1456 = vpop.trf.xlu0
      %v1457 = vpop.trf.xlu0
      %v1458 = vpop.trf.xlu0
      %1459 = vxpose.xlu0.b32.start [1/16] %v1350, 128
      %1460 = vxpose.xlu0.b32.cont [2/16] %v1355, 128
      %1461 = vxpose.xlu0.b32.cont [3/16] %v1360, 128
      %1462 = vxpose.xlu0.b32.cont [4/16] %v1365, 128
      %1463 = vxpose.xlu0.b32.cont [5/16] %v1370, 128
      %1464 = vxpose.xlu0.b32.cont [6/16] %v1375, 128
      %1465 = vxpose.xlu0.b32.cont [7/16] %v1380, 128
      %1466 = vxpose.xlu0.b32.cont [8/16] %v1385, 128
      %1467 = vxpose.xlu0.b32.cont [9/16] %v1390, 128
      %1468 = vxpose.xlu0.b32.cont [10/16] %v1395, 128
      %1469 = vxpose.xlu0.b32.cont [11/16] %v1400, 128
      %1470 = vxpose.xlu0.b32.cont [12/16] %v1405, 128
      %1471 = vxpose.xlu0.b32.cont [13/16] %v1410, 128
      %1472 = vxpose.xlu0.b32.cont [14/16] %v1415, 128
      %1473 = vxpose.xlu0.b32.cont [15/16] %v1420, 128
      %1474 = vxpose.xlu0.b32.end [16/16] %v1425, 128
      %v1475 = vpop.trf.xlu0
      %v1476 = vpop.trf.xlu0
      %v1477 = vpop.trf.xlu0
      %v1478 = vpop.trf.xlu0
      %v1479 = vpop.trf.xlu0
      %v1480 = vpop.trf.xlu0
      %v1481 = vpop.trf.xlu0
      %v1482 = vpop.trf.xlu0
      %v1483 = vpop.trf.xlu0
      %v1484 = vpop.trf.xlu0
      %v1485 = vpop.trf.xlu0
      %v1486 = vpop.trf.xlu0
      %v1487 = vpop.trf.xlu0
      %v1488 = vpop.trf.xlu0
      %v1489 = vpop.trf.xlu0
      %v1490 = vpop.trf.xlu0
      %v1491 = vlaneseq
      %v1492 = vshrl.u32 %v1491, 7
      %v1493 = vsub.s32 0, %v1492
      %v1494 = vrot.slane %v1443, %v1493
      %v1495 = vlaneseq
      %v1496 = vshrl.u32 %v1495, 7
      %v1497 = vsub.s32 0, %v1496
      %v1498 = vrot.slane %v1475, %v1497
      %v1499 = vmul.f32 %v170, %v1494
      %v1500 = vmul.f32 %v171, %v1498
      %v1501 = vld [vmem:[%s156] sm:$0xff]
      %v1502 = vld [vmem:[%s156 + $0x8] sm:$0xff]
      %1503 = vmatprep.subr.mxu0 %v755
      %1504 = vmatpush1.msra.mxu0 %v753
      %1505 = vmatprep.subr.mxu0 %v759
      %1506 = vmatpush1.msra.mxu0 %v757
      %1507 = vmatprep.subr.mxu0 %v763
      %1508 = vmatpush1.msra.mxu0 %v761
      %1509 = vmatprep.subr.mxu0 %v767
      %1510 = vmatpush1.msra.mxu0 %v765
      %1511 = vmatprep.subr.mxu0 %v771
      %1512 = vmatpush1.msra.mxu0 %v769
      %1513 = vmatprep.subr.mxu0 %v775
      %1514 = vmatpush1.msra.mxu0 %v773
      %1515 = vmatprep.subr.mxu0 %v779
      %1516 = vmatpush1.msra.mxu0 %v777
      %1517 = vmatprep.subr.mxu0 %v783
      %1518 = vmatpush1.msra.mxu0 %v781
      %1519 = vmatprep.subr.mxu0 %v787
      %1520 = vmatpush1.msra.mxu0 %v785
      %1521 = vmatprep.subr.mxu0 %v791
      %1522 = vmatpush1.msra.mxu0 %v789
      %1523 = vmatprep.subr.mxu0 %v795
      %1524 = vmatpush1.msra.mxu0 %v793
      %1525 = vmatprep.subr.mxu0 %v799
      %1526 = vmatpush1.msra.mxu0 %v797
      %1527 = vmatprep.subr.mxu0 %v803
      %1528 = vmatpush1.msra.mxu0 %v801
      %1529 = vmatprep.subr.mxu0 %v807
      %1530 = vmatpush1.msra.mxu0 %v805
      %1531 = vmatprep.subr.mxu0 %v811
      %1532 = vmatpush1.msra.mxu0 %v809
      %1533 = vmatprep.subr.mxu0 %v815
      %1534 = vmatpush1.msra.mxu0 %v813
      %1535 = vmatprep.subr.mxu0 %v819
      %1536 = vmatpush1.msra.mxu0 %v817
      %1537 = vmatprep.subr.mxu0 %v823
      %1538 = vmatpush1.msra.mxu0 %v821
      %1539 = vmatprep.subr.mxu0 %v827
      %1540 = vmatpush1.msra.mxu0 %v825
      %1541 = vmatprep.subr.mxu0 %v831
      %1542 = vmatpush1.msra.mxu0 %v829
      %1543 = vmatprep.subr.mxu0 %v835
      %1544 = vmatpush1.msra.mxu0 %v833
      %1545 = vmatprep.subr.mxu0 %v839
      %1546 = vmatpush1.msra.mxu0 %v837
      %1547 = vmatprep.subr.mxu0 %v843
      %1548 = vmatpush1.msra.mxu0 %v841
      %1549 = vmatprep.subr.mxu0 %v847
      %1550 = vmatpush1.msra.mxu0 %v845
      %1551 = vmatprep.subr.mxu0 %v851
      %1552 = vmatpush1.msra.mxu0 %v849
      %1553 = vmatprep.subr.mxu0 %v855
      %1554 = vmatpush1.msra.mxu0 %v853
      %1555 = vmatprep.subr.mxu0 %v859
      %1556 = vmatpush1.msra.mxu0 %v857
      %1557 = vmatprep.subr.mxu0 %v863
      %1558 = vmatpush1.msra.mxu0 %v861
      %1559 = vmatprep.subr.mxu0 %v867
      %1560 = vmatpush1.msra.mxu0 %v865
      %1561 = vmatprep.subr.mxu0 %v871
      %1562 = vmatpush1.msra.mxu0 %v869
      %1563 = vmatprep.subr.mxu0 %v875
      %1564 = vmatpush1.msra.mxu0 %v873
      %1565 = vmatprep.subr.mxu0 %v879
      %1566 = vmatpush1.msra.mxu0 %v877
      %1567 = vmatprep.mubr.f32.mxu0 %v1500
      %1568 = vmatmul.mubr.f32.gmra.mrb[0].mxu0 %v1499
      %v1569 = vpop.f32.mrb[0].mxu0
      %v1570 = vadd.f32 0.0, %v1569
      %v1571 = vpop.f32.mrb[0].mxu0
      %v1572 = vadd.f32 0.0, %v1571
      %1573 = vdwg.mxu0
      %v1574 = vadd.f32 %v1501, %v1570
      %v1575 = vadd.f32 %v1502, %v1572
      %1576 = vst [vmem:[%s156] sm:$0xff] %v1574
      %1577 = vst [vmem:[%s156 + $0x8] sm:$0xff] %v1575
      %p1578 = scmp.lt.s32.totalorder %s18, 1
      %s1579 = scalar_select %p1578, %s18, 1
      %s1580 = smul.addr %s1579, 2
      %s1581 = smul.addr %s1580, 8
      %s1582 = scalar_lea.vmem %s2, %s1581
      // Predicated region
      $region33: #{channel_attention.1} parent=27 // pred_check
        %p1583 = pneg %p91
      $region34: #{channel_attention.1} parent=27 // pred_check_branch
        %1585 = sbr.rel (%p1583) target = $region36
      $region35: #{channel_attention.1} parent=27 // pred_region
        _
      $region36: #{channel_attention.1} parent=27 // pred_fallthru
        _
    $region28: #{channel_attention.1} parent=5 // pred_fallthru
      _
    %p1586 = scmp.le.s32.totalorder 2, %s9
    // Predicated region
    $region37: #{channel_attention.1} parent=5 // pred_check
      %p1587 = pneg %p1586
    $region38: #{channel_attention.1} parent=5 // pred_check_branch
      %1589 = sbr.rel (%p1587) target = $region40
    $region39: #{channel_attention.1} parent=5 // pred_region
      %s1590 = ssub.s32 %s9, 2
      // Predicated region
      $region41: #{channel_attention.1} parent=39 // pred_check
        %p1591 = pneg %p97
      $region42: #{channel_attention.1} parent=39 // pred_check_branch
        %1593 = sbr.rel (%p1591) target = $region44
      $region43: #{channel_attention.1} parent=39 // pred_region
        %p1594 = scmp.lt.s32.totalorder %s20, 1
        %s1595 = scalar_select %p1594, %s20, 1
        %s1596 = smul.addr %s1595, 2
        %s1597 = smul.addr %s1596, 8
        %s1598 = scalar_lea.vmem %s2, %s1597
      $region44: #{channel_attention.1} parent=39 // pred_fallthru
        _
    $region40: #{channel_attention.1} parent=5 // pred_fallthru
      _
  $region6: #{channel_attention.1} parent=0 // loop_footer
    %s13 = sadd.s32 1, %s9
  $region7: #{channel_attention.1} parent=0 // loop_footer_branch
    %8 = sbr.rel target = $region3
  $region8: #{channel_attention.1} parent=0 // loop_exit
    _

</llo_original>
